<compile_context>
chip_gen: v6e
topology: v6e:2x2x1
jax: 0.10.0
libtpu: 0.0.40
codegen_flags: <defaults>
</compile_context>

<pallas_src>
import functools

import jax
import jax.numpy as jnp
from jax.experimental import pallas as pl
from jax.experimental.pallas import tpu as pltpu

INPUT_SIZE = 32
HIDDEN = 64
NUM_CLASSES = 10


def _lstm_kernel(x_ref, w1x_ref, w1h_ref, b1_ref, w2_ref, b2_ref,
                 wout_ref, bout_ref, out_ref, xproj_ref):
    H = HIDDEN
    Bp = out_ref.shape[0]                 # padded batch (multiple of 8)
    T = x_ref.shape[0] // Bp              # static at trace time

    # ---- Prologue: input projection for all T steps in one matmul ----------
    # (T*Bp, I) @ (I, 4H) + b1 — no dependence on the recurrent state, so it
    # is pulled off the latency-critical path entirely.
    xproj_ref[...] = (
        jnp.dot(x_ref[...], w1x_ref[...], preferred_element_type=jnp.float32)
        + b1_ref[...])

    # Hoist the layer-2 bias broadcast out of the loop (JAX does not CSE
    # broadcast_in_dim inside an unrolled loop).
    b2b = jnp.broadcast_to(b2_ref[...], (Bp, 4 * H))

    def activate(gates, c):
        # Gate layout [i | f | o | g]: one lane-dense sigmoid over (Bp, 3H),
        # one tanh over (Bp, H) — two EUP pushes per cell instead of four.
        sig = jax.nn.sigmoid(gates[:, :3 * H])
        g = jnp.tanh(gates[:, 3 * H:])
        i_g = sig[:, 0 * H:1 * H]
        f_g = sig[:, 1 * H:2 * H]
        o_g = sig[:, 2 * H:3 * H]
        c_new = f_g * c + i_g * g
        h_new = o_g * jnp.tanh(c_new)
        return h_new, c_new

    def step(t, carry):
        h1, c1, h2, c2 = carry
        off = pl.multiple_of(t * Bp, Bp)  # aligned sublane offset
        # Layer 1: only the recurrent matmul remains in the loop.
        g1 = (xproj_ref[pl.ds(off, Bp), :]
              + jnp.dot(h1, w1h_ref[...], preferred_element_type=jnp.float32))
        h1, c1 = activate(g1, c1)
        # Layer 2: fused [x_in, h] matmul, contraction = 2H = 128.
        xh = jnp.concatenate([h1, h2], axis=-1)
        g2 = jnp.dot(xh, w2_ref[...], preferred_element_type=jnp.float32) + b2b
        h2, c2 = activate(g2, c2)
        return h1, c1, h2, c2

    z = jnp.zeros((Bp, H), jnp.float32)
    _, _, h2, _ = jax.lax.fori_loop(0, T, step, (z, z, z, z), unroll=True)

    # Output projection once, on the final layer-2 hidden state.
    out_ref[...] = (
        jnp.dot(h2, wout_ref[...], preferred_element_type=jnp.float32)
        + bout_ref[...])


@jax.jit
def rnn_forward(x, params):
    """x: (B, T, INPUT_SIZE) float32 -> (B, NUM_CLASSES) float32."""
    B, T, I = x.shape
    H = HIDDEN

    # Pad batch to the sublane count (8) so vregs/MXU rows are not sub-tile.
    Bp = ((B + 7) // 8) * 8
    xp = jnp.pad(x, ((0, Bp - B), (0, 0), (0, 0)))          # (Bp, T, I)
    x_flat = jnp.transpose(xp, (1, 0, 2)).reshape(T * Bp, I)  # time-major, flat

    w1x, w1h, b1 = params["w1x"], params["w1h"], params["b1"]
    w2, b2 = params["w2"], params["b2"]
    wout, bout = params["wout"], params["bout"]

    def full(a):
        n = a.ndim
        return pl.BlockSpec(a.shape, lambda i, n=n: (0,) * n)

    grid_spec = pltpu.PrefetchScalarGridSpec(
        num_scalar_prefetch=0,
        grid=(1,),
        in_specs=[
            full(x_flat),
            full(w1x), full(w1h), full(b1),
            full(w2), full(b2),
            full(wout), full(bout),
        ],
        out_specs=pl.BlockSpec((Bp, NUM_CLASSES), lambda i: (0, 0)),
        scratch_shapes=[
            pltpu.VMEM((T * Bp, 4 * H), jnp.float32),  # hoisted x-projection
        ],
    )

    out = pl.pallas_call(
        _lstm_kernel,
        out_shape=jax.ShapeDtypeStruct((Bp, NUM_CLASSES), jnp.float32),
        grid_spec=grid_spec,
        compiler_params=pltpu.CompilerParams(
            dimension_semantics=("arbitrary",)),
    )(x_flat, w1x, w1h, b1, w2, b2, wout, bout)

    return out[:B]


def init_params(key):
    """PyTorch-style uniform(-1/sqrt(H), 1/sqrt(H)) init.

    Gate layout is [i | f | o | g] (sigmoid gates contiguous, tanh gate last)
    and layer-2 x/h weights are stacked into one (2H, 4H) matrix so the
    kernel does a single fused matmul per layer-2 step.
    """
    H, I = HIDDEN, INPUT_SIZE
    k = 1.0 / jnp.sqrt(H)
    keys = jax.random.split(key, 10)

    def u(kk, shape):
        return jax.random.uniform(kk, shape, jnp.float32, -k, k)

    w1x = u(keys[0], (I, 4 * H))
    w1h = u(keys[1], (H, 4 * H))
    b1 = u(keys[2], (4 * H,)) + u(keys[3], (4 * H,))   # b_ih + b_hh
    w2x = u(keys[4], (H, 4 * H))
    w2h = u(keys[5], (H, 4 * H))
    b2 = u(keys[6], (4 * H,)) + u(keys[7], (4 * H,))
    wout = u(keys[8], (H, NUM_CLASSES))
    bout = u(keys[9], (NUM_CLASSES,))

    return {
        "w1x": w1x, "w1h": w1h, "b1": b1.reshape(1, 4 * H),
        "w2": jnp.concatenate([w2x, w2h], axis=0), "b2": b2.reshape(1, 4 * H),
        "wout": wout, "bout": bout.reshape(1, NUM_CLASSES),
    }


def reference_forward(x, params):
    """Pure-JAX reference (scan over time) with identical math/layout."""
    B, T, _ = x.shape
    H = HIDDEN
    w1x, w1h, b1 = params["w1x"], params["w1h"], params["b1"]
    w2, b2 = params["w2"], params["b2"]
    wout, bout = params["wout"], params["bout"]

    def activate(gates, c):
        sig = jax.nn.sigmoid(gates[:, :3 * H])
        g = jnp.tanh(gates[:, 3 * H:])
        i_g, f_g, o_g = sig[:, :H], sig[:, H:2 * H], sig[:, 2 * H:3 * H]
        c_new = f_g * c + i_g * g
        return o_g * jnp.tanh(c_new), c_new

    def step(carry, x_t):
        h1, c1, h2, c2 = carry
        h1, c1 = activate(x_t @ w1x + b1 + h1 @ w1h, c1)
        h2, c2 = activate(jnp.concatenate([h1, h2], axis=-1) @ w2 + b2, c2)
        return (h1, c1, h2, c2), None

    z = jnp.zeros((B, H), jnp.float32)
    (_, _, h2, _), _ = jax.lax.scan(step, (z, z, z, z),
                                    jnp.transpose(x, (1, 0, 2)))
    return h2 @ wout + bout


if __name__ == "__main__":
    key = jax.random.PRNGKey(0)
    k_param, k_x = jax.random.split(key)
    params = init_params(k_param)

    B, T = 2, 8
    x = jax.random.normal(k_x, (B, T, INPUT_SIZE), jnp.float32)

    out = jax.block_until_ready(rnn_forward(x, params))

    ref = reference_forward(x, params)
    assert out.shape == (B, NUM_CLASSES)
    assert jnp.allclose(out, ref, atol=1e-5, rtol=1e-5), "mismatch vs reference"
    print("KERNEL_OK")
</pallas_src>

<mosaic_0001>
module attributes {stable_mosaic.version = 11 : i64} {
  func.func @_lstm_kernel(%arg0: i32, %arg1: memref<64x32xf32, #tpu.memory_space<vmem>>, %arg2: memref<32x256xf32, #tpu.memory_space<vmem>>, %arg3: memref<64x256xf32, #tpu.memory_space<vmem>>, %arg4: memref<1x256xf32, #tpu.memory_space<vmem>>, %arg5: memref<128x256xf32, #tpu.memory_space<vmem>>, %arg6: memref<1x256xf32, #tpu.memory_space<vmem>>, %arg7: memref<64x10xf32, #tpu.memory_space<vmem>>, %arg8: memref<1x10xf32, #tpu.memory_space<vmem>>, %arg9: memref<8x10xf32, #tpu.memory_space<vmem>>, %arg10: memref<64x256xf32, #tpu.memory_space<vmem>>) attributes {dimension_semantics = [#tpu.dimension_semantics<arbitrary>], iteration_bounds = array<i64: 1>, scalar_prefetch = 0 : i64, scratch_operands = 1 : i64, tpu.core_type = #tpu.core_type<tc>, window_params = [{pipeline_mode = #tpu.pipeline_mode<synchronous>, transform_indices = @transform_0, window_bounds = array<i64: 64, 32>}, {pipeline_mode = #tpu.pipeline_mode<synchronous>, transform_indices = @transform_1, window_bounds = array<i64: 32, 256>}, {pipeline_mode = #tpu.pipeline_mode<synchronous>, transform_indices = @transform_2, window_bounds = array<i64: 64, 256>}, {pipeline_mode = #tpu.pipeline_mode<synchronous>, transform_indices = @transform_3, window_bounds = array<i64: 1, 256>}, {pipeline_mode = #tpu.pipeline_mode<synchronous>, transform_indices = @transform_4, window_bounds = array<i64: 128, 256>}, {pipeline_mode = #tpu.pipeline_mode<synchronous>, transform_indices = @transform_5, window_bounds = array<i64: 1, 256>}, {pipeline_mode = #tpu.pipeline_mode<synchronous>, transform_indices = @transform_6, window_bounds = array<i64: 64, 10>}, {pipeline_mode = #tpu.pipeline_mode<synchronous>, transform_indices = @transform_7, window_bounds = array<i64: 1, 10>}, {pipeline_mode = #tpu.pipeline_mode<synchronous>, transform_indices = @transform_8, window_bounds = array<i64: 8, 10>}]} {
    %c0 = arith.constant 0 : index
    %c0_0 = arith.constant 0 : index
    %0 = vector.load %arg1[%c0, %c0_0] : memref<64x32xf32, #tpu.memory_space<vmem>>, vector<64x32xf32>
    %c0_1 = arith.constant 0 : index
    %c0_2 = arith.constant 0 : index
    %1 = vector.load %arg2[%c0_1, %c0_2] : memref<32x256xf32, #tpu.memory_space<vmem>>, vector<32x256xf32>
    %cst = arith.constant dense<0.000000e+00> : vector<64x256xf32>
    %2 = tpu.matmul %0, %1, %cst {dimension_numbers = #tpu.dot_dimension_numbers<[1], [0], [0], [1], [0, 0, 1, 1], [], []>} : vector<64x32xf32>, vector<32x256xf32>, vector<64x256xf32> -> vector<64x256xf32>
    %c0_3 = arith.constant 0 : index
    %c0_4 = arith.constant 0 : index
    %3 = vector.load %arg4[%c0_3, %c0_4] : memref<1x256xf32, #tpu.memory_space<vmem>>, vector<1x256xf32>
    %4 = vector.broadcast %3 : vector<1x256xf32> to vector<64x256xf32>
    %5 = arith.addf %2, %4 : vector<64x256xf32>
    %c0_5 = arith.constant 0 : index
    %c0_6 = arith.constant 0 : index
    %6 = vector.load %arg10[%c0_5, %c0_6] : memref<64x256xf32, #tpu.memory_space<vmem>>, vector<64x256xf32>
    tpu.vector_store %arg10[%c0_5, %c0_6], %5 {strides = array<i32>} : memref<64x256xf32, #tpu.memory_space<vmem>>, vector<64x256xf32>,
    %c0_7 = arith.constant 0 : index
    %c0_8 = arith.constant 0 : index
    %7 = vector.load %arg6[%c0_7, %c0_8] : memref<1x256xf32, #tpu.memory_space<vmem>>, vector<1x256xf32>
    %8 = vector.shape_cast %7 : vector<1x256xf32> to vector<1x256xf32>
    %9 = vector.broadcast %8 : vector<1x256xf32> to vector<8x256xf32>
    %cst_9 = arith.constant 0.000000e+00 : f32
    %10 = vector.broadcast %cst_9 : f32 to vector<8x64xf32>
    %c0_i32 = arith.constant 0 : i32
    %c8_i32 = arith.constant 8 : i32
    %11 = arith.muli %c0_i32, %c8_i32 : i32
    %12 = tpu.assume_multiple %11, 8 : i32
    %13 = arith.index_cast %12 : i32 to index
    %c0_10 = arith.constant 0 : index
    %14 = vector.load %arg10[%13, %c0_10] : memref<64x256xf32, #tpu.memory_space<vmem>>, vector<8x256xf32>
    %c0_11 = arith.constant 0 : index
    %c0_12 = arith.constant 0 : index
    %15 = vector.load %arg3[%c0_11, %c0_12] : memref<64x256xf32, #tpu.memory_space<vmem>>, vector<64x256xf32>
    %cst_13 = arith.constant dense<0.000000e+00> : vector<8x256xf32>
    %16 = tpu.matmul %10, %15, %cst_13 {dimension_numbers = #tpu.dot_dimension_numbers<[1], [0], [0], [1], [0, 0, 1, 1], [], []>} : vector<8x64xf32>, vector<64x256xf32>, vector<8x256xf32> -> vector<8x256xf32>
    %17 = arith.addf %14, %16 : vector<8x256xf32>
    %18 = vector.extract_strided_slice %17 {offsets = [0, 0], sizes = [8, 192], strides = [1, 1]} : vector<8x256xf32> to vector<8x192xf32>
    %19 = arith.negf %18 : vector<8x192xf32>
    %20 = math.exp %19 : vector<8x192xf32>
    %cst_14 = arith.constant 1.000000e+00 : f32
    %21 = vector.broadcast %cst_14 : f32 to vector<8x192xf32>
    %22 = arith.addf %21, %20 : vector<8x192xf32>
    %23 = arith.divf %21, %22 : vector<8x192xf32>
    %24 = vector.extract_strided_slice %17 {offsets = [0, 192], sizes = [8, 64], strides = [1, 1]} : vector<8x256xf32> to vector<8x64xf32>
    %25 = math.tanh %24 : vector<8x64xf32>
    %26 = vector.extract_strided_slice %23 {offsets = [0, 0], sizes = [8, 64], strides = [1, 1]} : vector<8x192xf32> to vector<8x64xf32>
    %27 = vector.extract_strided_slice %23 {offsets = [0, 64], sizes = [8, 64], strides = [1, 1]} : vector<8x192xf32> to vector<8x64xf32>
    %28 = vector.extract_strided_slice %23 {offsets = [0, 128], sizes = [8, 64], strides = [1, 1]} : vector<8x192xf32> to vector<8x64xf32>
    %29 = arith.mulf %27, %10 : vector<8x64xf32>
    %30 = arith.mulf %26, %25 : vector<8x64xf32>
    %31 = arith.addf %29, %30 : vector<8x64xf32>
    %32 = math.tanh %31 : vector<8x64xf32>
    %33 = arith.mulf %28, %32 : vector<8x64xf32>
    %34 = tpu.concatenate %33, %10 in 1 : vector<8x64xf32>, vector<8x64xf32> -> vector<8x128xf32>
    %c0_15 = arith.constant 0 : index
    %c0_16 = arith.constant 0 : index
    %35 = vector.load %arg5[%c0_15, %c0_16] : memref<128x256xf32, #tpu.memory_space<vmem>>, vector<128x256xf32>
    %cst_17 = arith.constant dense<0.000000e+00> : vector<8x256xf32>
    %36 = tpu.matmul %34, %35, %cst_17 {dimension_numbers = #tpu.dot_dimension_numbers<[1], [0], [0], [1], [0, 0, 1, 1], [], []>} : vector<8x128xf32>, vector<128x256xf32>, vector<8x256xf32> -> vector<8x256xf32>
    %37 = arith.addf %36, %9 : vector<8x256xf32>
    %38 = vector.extract_strided_slice %37 {offsets = [0, 0], sizes = [8, 192], strides = [1, 1]} : vector<8x256xf32> to vector<8x192xf32>
    %39 = arith.negf %38 : vector<8x192xf32>
    %40 = math.exp %39 : vector<8x192xf32>
    %cst_18 = arith.constant 1.000000e+00 : f32
    %41 = vector.broadcast %cst_18 : f32 to vector<8x192xf32>
    %42 = arith.addf %41, %40 : vector<8x192xf32>
    %43 = arith.divf %41, %42 : vector<8x192xf32>
    %44 = vector.extract_strided_slice %37 {offsets = [0, 192], sizes = [8, 64], strides = [1, 1]} : vector<8x256xf32> to vector<8x64xf32>
    %45 = math.tanh %44 : vector<8x64xf32>
    %46 = vector.extract_strided_slice %43 {offsets = [0, 0], sizes = [8, 64], strides = [1, 1]} : vector<8x192xf32> to vector<8x64xf32>
    %47 = vector.extract_strided_slice %43 {offsets = [0, 64], sizes = [8, 64], strides = [1, 1]} : vector<8x192xf32> to vector<8x64xf32>
    %48 = vector.extract_strided_slice %43 {offsets = [0, 128], sizes = [8, 64], strides = [1, 1]} : vector<8x192xf32> to vector<8x64xf32>
    %49 = arith.mulf %47, %10 : vector<8x64xf32>
    %50 = arith.mulf %46, %45 : vector<8x64xf32>
    %51 = arith.addf %49, %50 : vector<8x64xf32>
    %52 = math.tanh %51 : vector<8x64xf32>
    %53 = arith.mulf %48, %52 : vector<8x64xf32>
    %c1_i32 = arith.constant 1 : i32
    %c8_i32_19 = arith.constant 8 : i32
    %54 = arith.muli %c1_i32, %c8_i32_19 : i32
    %55 = tpu.assume_multiple %54, 8 : i32
    %56 = arith.index_cast %55 : i32 to index
    %c0_20 = arith.constant 0 : index
    %57 = vector.load %arg10[%56, %c0_20] : memref<64x256xf32, #tpu.memory_space<vmem>>, vector<8x256xf32>
    %c0_21 = arith.constant 0 : index
    %c0_22 = arith.constant 0 : index
    %58 = vector.load %arg3[%c0_21, %c0_22] : memref<64x256xf32, #tpu.memory_space<vmem>>, vector<64x256xf32>
    %cst_23 = arith.constant dense<0.000000e+00> : vector<8x256xf32>
    %59 = tpu.matmul %33, %58, %cst_23 {dimension_numbers = #tpu.dot_dimension_numbers<[1], [0], [0], [1], [0, 0, 1, 1], [], []>} : vector<8x64xf32>, vector<64x256xf32>, vector<8x256xf32> -> vector<8x256xf32>
    %60 = arith.addf %57, %59 : vector<8x256xf32>
    %61 = vector.extract_strided_slice %60 {offsets = [0, 0], sizes = [8, 192], strides = [1, 1]} : vector<8x256xf32> to vector<8x192xf32>
    %62 = arith.negf %61 : vector<8x192xf32>
    %63 = math.exp %62 : vector<8x192xf32>
    %cst_24 = arith.constant 1.000000e+00 : f32
    %64 = vector.broadcast %cst_24 : f32 to vector<8x192xf32>
    %65 = arith.addf %64, %63 : vector<8x192xf32>
    %66 = arith.divf %64, %65 : vector<8x192xf32>
    %67 = vector.extract_strided_slice %60 {offsets = [0, 192], sizes = [8, 64], strides = [1, 1]} : vector<8x256xf32> to vector<8x64xf32>
    %68 = math.tanh %67 : vector<8x64xf32>
    %69 = vector.extract_strided_slice %66 {offsets = [0, 0], sizes = [8, 64], strides = [1, 1]} : vector<8x192xf32> to vector<8x64xf32>
    %70 = vector.extract_strided_slice %66 {offsets = [0, 64], sizes = [8, 64], strides = [1, 1]} : vector<8x192xf32> to vector<8x64xf32>
    %71 = vector.extract_strided_slice %66 {offsets = [0, 128], sizes = [8, 64], strides = [1, 1]} : vector<8x192xf32> to vector<8x64xf32>
    %72 = arith.mulf %70, %31 : vector<8x64xf32>
    %73 = arith.mulf %69, %68 : vector<8x64xf32>
    %74 = arith.addf %72, %73 : vector<8x64xf32>
    %75 = math.tanh %74 : vector<8x64xf32>
    %76 = arith.mulf %71, %75 : vector<8x64xf32>
    %77 = tpu.concatenate %76, %53 in 1 : vector<8x64xf32>, vector<8x64xf32> -> vector<8x128xf32>
    %c0_25 = arith.constant 0 : index
    %c0_26 = arith.constant 0 : index
    %78 = vector.load %arg5[%c0_25, %c0_26] : memref<128x256xf32, #tpu.memory_space<vmem>>, vector<128x256xf32>
    %cst_27 = arith.constant dense<0.000000e+00> : vector<8x256xf32>
    %79 = tpu.matmul %77, %78, %cst_27 {dimension_numbers = #tpu.dot_dimension_numbers<[1], [0], [0], [1], [0, 0, 1, 1], [], []>} : vector<8x128xf32>, vector<128x256xf32>, vector<8x256xf32> -> vector<8x256xf32>
    %80 = arith.addf %79, %9 : vector<8x256xf32>
    %81 = vector.extract_strided_slice %80 {offsets = [0, 0], sizes = [8, 192], strides = [1, 1]} : vector<8x256xf32> to vector<8x192xf32>
    %82 = arith.negf %81 : vector<8x192xf32>
    %83 = math.exp %82 : vector<8x192xf32>
    %cst_28 = arith.constant 1.000000e+00 : f32
    %84 = vector.broadcast %cst_28 : f32 to vector<8x192xf32>
    %85 = arith.addf %84, %83 : vector<8x192xf32>
    %86 = arith.divf %84, %85 : vector<8x192xf32>
    %87 = vector.extract_strided_slice %80 {offsets = [0, 192], sizes = [8, 64], strides = [1, 1]} : vector<8x256xf32> to vector<8x64xf32>
    %88 = math.tanh %87 : vector<8x64xf32>
    %89 = vector.extract_strided_slice %86 {offsets = [0, 0], sizes = [8, 64], strides = [1, 1]} : vector<8x192xf32> to vector<8x64xf32>
    %90 = vector.extract_strided_slice %86 {offsets = [0, 64], sizes = [8, 64], strides = [1, 1]} : vector<8x192xf32> to vector<8x64xf32>
    %91 = vector.extract_strided_slice %86 {offsets = [0, 128], sizes = [8, 64], strides = [1, 1]} : vector<8x192xf32> to vector<8x64xf32>
    %92 = arith.mulf %90, %51 : vector<8x64xf32>
    %93 = arith.mulf %89, %88 : vector<8x64xf32>
    %94 = arith.addf %92, %93 : vector<8x64xf32>
    %95 = math.tanh %94 : vector<8x64xf32>
    %96 = arith.mulf %91, %95 : vector<8x64xf32>
    %c2_i32 = arith.constant 2 : i32
    %c8_i32_29 = arith.constant 8 : i32
    %97 = arith.muli %c2_i32, %c8_i32_29 : i32
    %98 = tpu.assume_multiple %97, 8 : i32
    %99 = arith.index_cast %98 : i32 to index
    %c0_30 = arith.constant 0 : index
    %100 = vector.load %arg10[%99, %c0_30] : memref<64x256xf32, #tpu.memory_space<vmem>>, vector<8x256xf32>
    %c0_31 = arith.constant 0 : index
    %c0_32 = arith.constant 0 : index
    %101 = vector.load %arg3[%c0_31, %c0_32] : memref<64x256xf32, #tpu.memory_space<vmem>>, vector<64x256xf32>
    %cst_33 = arith.constant dense<0.000000e+00> : vector<8x256xf32>
    %102 = tpu.matmul %76, %101, %cst_33 {dimension_numbers = #tpu.dot_dimension_numbers<[1], [0], [0], [1], [0, 0, 1, 1], [], []>} : vector<8x64xf32>, vector<64x256xf32>, vector<8x256xf32> -> vector<8x256xf32>
    %103 = arith.addf %100, %102 : vector<8x256xf32>
    %104 = vector.extract_strided_slice %103 {offsets = [0, 0], sizes = [8, 192], strides = [1, 1]} : vector<8x256xf32> to vector<8x192xf32>
    %105 = arith.negf %104 : vector<8x192xf32>
    %106 = math.exp %105 : vector<8x192xf32>
    %cst_34 = arith.constant 1.000000e+00 : f32
    %107 = vector.broadcast %cst_34 : f32 to vector<8x192xf32>
    %108 = arith.addf %107, %106 : vector<8x192xf32>
    %109 = arith.divf %107, %108 : vector<8x192xf32>
    %110 = vector.extract_strided_slice %103 {offsets = [0, 192], sizes = [8, 64], strides = [1, 1]} : vector<8x256xf32> to vector<8x64xf32>
    %111 = math.tanh %110 : vector<8x64xf32>
    %112 = vector.extract_strided_slice %109 {offsets = [0, 0], sizes = [8, 64], strides = [1, 1]} : vector<8x192xf32> to vector<8x64xf32>
    %113 = vector.extract_strided_slice %109 {offsets = [0, 64], sizes = [8, 64], strides = [1, 1]} : vector<8x192xf32> to vector<8x64xf32>
    %114 = vector.extract_strided_slice %109 {offsets = [0, 128], sizes = [8, 64], strides = [1, 1]} : vector<8x192xf32> to vector<8x64xf32>
    %115 = arith.mulf %113, %74 : vector<8x64xf32>
    %116 = arith.mulf %112, %111 : vector<8x64xf32>
    %117 = arith.addf %115, %116 : vector<8x64xf32>
    %118 = math.tanh %117 : vector<8x64xf32>
    %119 = arith.mulf %114, %118 : vector<8x64xf32>
    %120 = tpu.concatenate %119, %96 in 1 : vector<8x64xf32>, vector<8x64xf32> -> vector<8x128xf32>
    %c0_35 = arith.constant 0 : index
    %c0_36 = arith.constant 0 : index
    %121 = vector.load %arg5[%c0_35, %c0_36] : memref<128x256xf32, #tpu.memory_space<vmem>>, vector<128x256xf32>
    %cst_37 = arith.constant dense<0.000000e+00> : vector<8x256xf32>
    %122 = tpu.matmul %120, %121, %cst_37 {dimension_numbers = #tpu.dot_dimension_numbers<[1], [0], [0], [1], [0, 0, 1, 1], [], []>} : vector<8x128xf32>, vector<128x256xf32>, vector<8x256xf32> -> vector<8x256xf32>
    %123 = arith.addf %122, %9 : vector<8x256xf32>
    %124 = vector.extract_strided_slice %123 {offsets = [0, 0], sizes = [8, 192], strides = [1, 1]} : vector<8x256xf32> to vector<8x192xf32>
    %125 = arith.negf %124 : vector<8x192xf32>
    %126 = math.exp %125 : vector<8x192xf32>
    %cst_38 = arith.constant 1.000000e+00 : f32
    %127 = vector.broadcast %cst_38 : f32 to vector<8x192xf32>
    %128 = arith.addf %127, %126 : vector<8x192xf32>
    %129 = arith.divf %127, %128 : vector<8x192xf32>
    %130 = vector.extract_strided_slice %123 {offsets = [0, 192], sizes = [8, 64], strides = [1, 1]} : vector<8x256xf32> to vector<8x64xf32>
    %131 = math.tanh %130 : vector<8x64xf32>
    %132 = vector.extract_strided_slice %129 {offsets = [0, 0], sizes = [8, 64], strides = [1, 1]} : vector<8x192xf32> to vector<8x64xf32>
    %133 = vector.extract_strided_slice %129 {offsets = [0, 64], sizes = [8, 64], strides = [1, 1]} : vector<8x192xf32> to vector<8x64xf32>
    %134 = vector.extract_strided_slice %129 {offsets = [0, 128], sizes = [8, 64], strides = [1, 1]} : vector<8x192xf32> to vector<8x64xf32>
    %135 = arith.mulf %133, %94 : vector<8x64xf32>
    %136 = arith.mulf %132, %131 : vector<8x64xf32>
    %137 = arith.addf %135, %136 : vector<8x64xf32>
    %138 = math.tanh %137 : vector<8x64xf32>
    %139 = arith.mulf %134, %138 : vector<8x64xf32>
    %c3_i32 = arith.constant 3 : i32
    %c8_i32_39 = arith.constant 8 : i32
    %140 = arith.muli %c3_i32, %c8_i32_39 : i32
    %141 = tpu.assume_multiple %140, 8 : i32
    %142 = arith.index_cast %141 : i32 to index
    %c0_40 = arith.constant 0 : index
    %143 = vector.load %arg10[%142, %c0_40] : memref<64x256xf32, #tpu.memory_space<vmem>>, vector<8x256xf32>
    %c0_41 = arith.constant 0 : index
    %c0_42 = arith.constant 0 : index
    %144 = vector.load %arg3[%c0_41, %c0_42] : memref<64x256xf32, #tpu.memory_space<vmem>>, vector<64x256xf32>
    %cst_43 = arith.constant dense<0.000000e+00> : vector<8x256xf32>
    %145 = tpu.matmul %119, %144, %cst_43 {dimension_numbers = #tpu.dot_dimension_numbers<[1], [0], [0], [1], [0, 0, 1, 1], [], []>} : vector<8x64xf32>, vector<64x256xf32>, vector<8x256xf32> -> vector<8x256xf32>
    %146 = arith.addf %143, %145 : vector<8x256xf32>
    %147 = vector.extract_strided_slice %146 {offsets = [0, 0], sizes = [8, 192], strides = [1, 1]} : vector<8x256xf32> to vector<8x192xf32>
    %148 = arith.negf %147 : vector<8x192xf32>
    %149 = math.exp %148 : vector<8x192xf32>
    %cst_44 = arith.constant 1.000000e+00 : f32
    %150 = vector.broadcast %cst_44 : f32 to vector<8x192xf32>
    %151 = arith.addf %150, %149 : vector<8x192xf32>
    %152 = arith.divf %150, %151 : vector<8x192xf32>
    %153 = vector.extract_strided_slice %146 {offsets = [0, 192], sizes = [8, 64], strides = [1, 1]} : vector<8x256xf32> to vector<8x64xf32>
    %154 = math.tanh %153 : vector<8x64xf32>
    %155 = vector.extract_strided_slice %152 {offsets = [0, 0], sizes = [8, 64], strides = [1, 1]} : vector<8x192xf32> to vector<8x64xf32>
    %156 = vector.extract_strided_slice %152 {offsets = [0, 64], sizes = [8, 64], strides = [1, 1]} : vector<8x192xf32> to vector<8x64xf32>
    %157 = vector.extract_strided_slice %152 {offsets = [0, 128], sizes = [8, 64], strides = [1, 1]} : vector<8x192xf32> to vector<8x64xf32>
    %158 = arith.mulf %156, %117 : vector<8x64xf32>
    %159 = arith.mulf %155, %154 : vector<8x64xf32>
    %160 = arith.addf %158, %159 : vector<8x64xf32>
    %161 = math.tanh %160 : vector<8x64xf32>
    %162 = arith.mulf %157, %161 : vector<8x64xf32>
    %163 = tpu.concatenate %162, %139 in 1 : vector<8x64xf32>, vector<8x64xf32> -> vector<8x128xf32>
    %c0_45 = arith.constant 0 : index
    %c0_46 = arith.constant 0 : index
    %164 = vector.load %arg5[%c0_45, %c0_46] : memref<128x256xf32, #tpu.memory_space<vmem>>, vector<128x256xf32>
    %cst_47 = arith.constant dense<0.000000e+00> : vector<8x256xf32>
    %165 = tpu.matmul %163, %164, %cst_47 {dimension_numbers = #tpu.dot_dimension_numbers<[1], [0], [0], [1], [0, 0, 1, 1], [], []>} : vector<8x128xf32>, vector<128x256xf32>, vector<8x256xf32> -> vector<8x256xf32>
    %166 = arith.addf %165, %9 : vector<8x256xf32>
    %167 = vector.extract_strided_slice %166 {offsets = [0, 0], sizes = [8, 192], strides = [1, 1]} : vector<8x256xf32> to vector<8x192xf32>
    %168 = arith.negf %167 : vector<8x192xf32>
    %169 = math.exp %168 : vector<8x192xf32>
    %cst_48 = arith.constant 1.000000e+00 : f32
    %170 = vector.broadcast %cst_48 : f32 to vector<8x192xf32>
    %171 = arith.addf %170, %169 : vector<8x192xf32>
    %172 = arith.divf %170, %171 : vector<8x192xf32>
    %173 = vector.extract_strided_slice %166 {offsets = [0, 192], sizes = [8, 64], strides = [1, 1]} : vector<8x256xf32> to vector<8x64xf32>
    %174 = math.tanh %173 : vector<8x64xf32>
    %175 = vector.extract_strided_slice %172 {offsets = [0, 0], sizes = [8, 64], strides = [1, 1]} : vector<8x192xf32> to vector<8x64xf32>
    %176 = vector.extract_strided_slice %172 {offsets = [0, 64], sizes = [8, 64], strides = [1, 1]} : vector<8x192xf32> to vector<8x64xf32>
    %177 = vector.extract_strided_slice %172 {offsets = [0, 128], sizes = [8, 64], strides = [1, 1]} : vector<8x192xf32> to vector<8x64xf32>
    %178 = arith.mulf %176, %137 : vector<8x64xf32>
    %179 = arith.mulf %175, %174 : vector<8x64xf32>
    %180 = arith.addf %178, %179 : vector<8x64xf32>
    %181 = math.tanh %180 : vector<8x64xf32>
    %182 = arith.mulf %177, %181 : vector<8x64xf32>
    %c4_i32 = arith.constant 4 : i32
    %c8_i32_49 = arith.constant 8 : i32
    %183 = arith.muli %c4_i32, %c8_i32_49 : i32
    %184 = tpu.assume_multiple %183, 8 : i32
    %185 = arith.index_cast %184 : i32 to index
    %c0_50 = arith.constant 0 : index
    %186 = vector.load %arg10[%185, %c0_50] : memref<64x256xf32, #tpu.memory_space<vmem>>, vector<8x256xf32>
    %c0_51 = arith.constant 0 : index
    %c0_52 = arith.constant 0 : index
    %187 = vector.load %arg3[%c0_51, %c0_52] : memref<64x256xf32, #tpu.memory_space<vmem>>, vector<64x256xf32>
    %cst_53 = arith.constant dense<0.000000e+00> : vector<8x256xf32>
    %188 = tpu.matmul %162, %187, %cst_53 {dimension_numbers = #tpu.dot_dimension_numbers<[1], [0], [0], [1], [0, 0, 1, 1], [], []>} : vector<8x64xf32>, vector<64x256xf32>, vector<8x256xf32> -> vector<8x256xf32>
    %189 = arith.addf %186, %188 : vector<8x256xf32>
    %190 = vector.extract_strided_slice %189 {offsets = [0, 0], sizes = [8, 192], strides = [1, 1]} : vector<8x256xf32> to vector<8x192xf32>
    %191 = arith.negf %190 : vector<8x192xf32>
    %192 = math.exp %191 : vector<8x192xf32>
    %cst_54 = arith.constant 1.000000e+00 : f32
    %193 = vector.broadcast %cst_54 : f32 to vector<8x192xf32>
    %194 = arith.addf %193, %192 : vector<8x192xf32>
    %195 = arith.divf %193, %194 : vector<8x192xf32>
    %196 = vector.extract_strided_slice %189 {offsets = [0, 192], sizes = [8, 64], strides = [1, 1]} : vector<8x256xf32> to vector<8x64xf32>
    %197 = math.tanh %196 : vector<8x64xf32>
    %198 = vector.extract_strided_slice %195 {offsets = [0, 0], sizes = [8, 64], strides = [1, 1]} : vector<8x192xf32> to vector<8x64xf32>
    %199 = vector.extract_strided_slice %195 {offsets = [0, 64], sizes = [8, 64], strides = [1, 1]} : vector<8x192xf32> to vector<8x64xf32>
    %200 = vector.extract_strided_slice %195 {offsets = [0, 128], sizes = [8, 64], strides = [1, 1]} : vector<8x192xf32> to vector<8x64xf32>
    %201 = arith.mulf %199, %160 : vector<8x64xf32>
    %202 = arith.mulf %198, %197 : vector<8x64xf32>
    %203 = arith.addf %201, %202 : vector<8x64xf32>
    %204 = math.tanh %203 : vector<8x64xf32>
    %205 = arith.mulf %200, %204 : vector<8x64xf32>
    %206 = tpu.concatenate %205, %182 in 1 : vector<8x64xf32>, vector<8x64xf32> -> vector<8x128xf32>
    %c0_55 = arith.constant 0 : index
    %c0_56 = arith.constant 0 : index
    %207 = vector.load %arg5[%c0_55, %c0_56] : memref<128x256xf32, #tpu.memory_space<vmem>>, vector<128x256xf32>
    %cst_57 = arith.constant dense<0.000000e+00> : vector<8x256xf32>
    %208 = tpu.matmul %206, %207, %cst_57 {dimension_numbers = #tpu.dot_dimension_numbers<[1], [0], [0], [1], [0, 0, 1, 1], [], []>} : vector<8x128xf32>, vector<128x256xf32>, vector<8x256xf32> -> vector<8x256xf32>
    %209 = arith.addf %208, %9 : vector<8x256xf32>
    %210 = vector.extract_strided_slice %209 {offsets = [0, 0], sizes = [8, 192], strides = [1, 1]} : vector<8x256xf32> to vector<8x192xf32>
    %211 = arith.negf %210 : vector<8x192xf32>
    %212 = math.exp %211 : vector<8x192xf32>
    %cst_58 = arith.constant 1.000000e+00 : f32
    %213 = vector.broadcast %cst_58 : f32 to vector<8x192xf32>
    %214 = arith.addf %213, %212 : vector<8x192xf32>
    %215 = arith.divf %213, %214 : vector<8x192xf32>
    %216 = vector.extract_strided_slice %209 {offsets = [0, 192], sizes = [8, 64], strides = [1, 1]} : vector<8x256xf32> to vector<8x64xf32>
    %217 = math.tanh %216 : vector<8x64xf32>
    %218 = vector.extract_strided_slice %215 {offsets = [0, 0], sizes = [8, 64], strides = [1, 1]} : vector<8x192xf32> to vector<8x64xf32>
    %219 = vector.extract_strided_slice %215 {offsets = [0, 64], sizes = [8, 64], strides = [1, 1]} : vector<8x192xf32> to vector<8x64xf32>
    %220 = vector.extract_strided_slice %215 {offsets = [0, 128], sizes = [8, 64], strides = [1, 1]} : vector<8x192xf32> to vector<8x64xf32>
    %221 = arith.mulf %219, %180 : vector<8x64xf32>
    %222 = arith.mulf %218, %217 : vector<8x64xf32>
    %223 = arith.addf %221, %222 : vector<8x64xf32>
    %224 = math.tanh %223 : vector<8x64xf32>
    %225 = arith.mulf %220, %224 : vector<8x64xf32>
    %c5_i32 = arith.constant 5 : i32
    %c8_i32_59 = arith.constant 8 : i32
    %226 = arith.muli %c5_i32, %c8_i32_59 : i32
    %227 = tpu.assume_multiple %226, 8 : i32
    %228 = arith.index_cast %227 : i32 to index
    %c0_60 = arith.constant 0 : index
    %229 = vector.load %arg10[%228, %c0_60] : memref<64x256xf32, #tpu.memory_space<vmem>>, vector<8x256xf32>
    %c0_61 = arith.constant 0 : index
    %c0_62 = arith.constant 0 : index
    %230 = vector.load %arg3[%c0_61, %c0_62] : memref<64x256xf32, #tpu.memory_space<vmem>>, vector<64x256xf32>
    %cst_63 = arith.constant dense<0.000000e+00> : vector<8x256xf32>
    %231 = tpu.matmul %205, %230, %cst_63 {dimension_numbers = #tpu.dot_dimension_numbers<[1], [0], [0], [1], [0, 0, 1, 1], [], []>} : vector<8x64xf32>, vector<64x256xf32>, vector<8x256xf32> -> vector<8x256xf32>
    %232 = arith.addf %229, %231 : vector<8x256xf32>
    %233 = vector.extract_strided_slice %232 {offsets = [0, 0], sizes = [8, 192], strides = [1, 1]} : vector<8x256xf32> to vector<8x192xf32>
    %234 = arith.negf %233 : vector<8x192xf32>
    %235 = math.exp %234 : vector<8x192xf32>
    %cst_64 = arith.constant 1.000000e+00 : f32
    %236 = vector.broadcast %cst_64 : f32 to vector<8x192xf32>
    %237 = arith.addf %236, %235 : vector<8x192xf32>
    %238 = arith.divf %236, %237 : vector<8x192xf32>
    %239 = vector.extract_strided_slice %232 {offsets = [0, 192], sizes = [8, 64], strides = [1, 1]} : vector<8x256xf32> to vector<8x64xf32>
    %240 = math.tanh %239 : vector<8x64xf32>
    %241 = vector.extract_strided_slice %238 {offsets = [0, 0], sizes = [8, 64], strides = [1, 1]} : vector<8x192xf32> to vector<8x64xf32>
    %242 = vector.extract_strided_slice %238 {offsets = [0, 64], sizes = [8, 64], strides = [1, 1]} : vector<8x192xf32> to vector<8x64xf32>
    %243 = vector.extract_strided_slice %238 {offsets = [0, 128], sizes = [8, 64], strides = [1, 1]} : vector<8x192xf32> to vector<8x64xf32>
    %244 = arith.mulf %242, %203 : vector<8x64xf32>
    %245 = arith.mulf %241, %240 : vector<8x64xf32>
    %246 = arith.addf %244, %245 : vector<8x64xf32>
    %247 = math.tanh %246 : vector<8x64xf32>
    %248 = arith.mulf %243, %247 : vector<8x64xf32>
    %249 = tpu.concatenate %248, %225 in 1 : vector<8x64xf32>, vector<8x64xf32> -> vector<8x128xf32>
    %c0_65 = arith.constant 0 : index
    %c0_66 = arith.constant 0 : index
    %250 = vector.load %arg5[%c0_65, %c0_66] : memref<128x256xf32, #tpu.memory_space<vmem>>, vector<128x256xf32>
    %cst_67 = arith.constant dense<0.000000e+00> : vector<8x256xf32>
    %251 = tpu.matmul %249, %250, %cst_67 {dimension_numbers = #tpu.dot_dimension_numbers<[1], [0], [0], [1], [0, 0, 1, 1], [], []>} : vector<8x128xf32>, vector<128x256xf32>, vector<8x256xf32> -> vector<8x256xf32>
    %252 = arith.addf %251, %9 : vector<8x256xf32>
    %253 = vector.extract_strided_slice %252 {offsets = [0, 0], sizes = [8, 192], strides = [1, 1]} : vector<8x256xf32> to vector<8x192xf32>
    %254 = arith.negf %253 : vector<8x192xf32>
    %255 = math.exp %254 : vector<8x192xf32>
    %cst_68 = arith.constant 1.000000e+00 : f32
    %256 = vector.broadcast %cst_68 : f32 to vector<8x192xf32>
    %257 = arith.addf %256, %255 : vector<8x192xf32>
    %258 = arith.divf %256, %257 : vector<8x192xf32>
    %259 = vector.extract_strided_slice %252 {offsets = [0, 192], sizes = [8, 64], strides = [1, 1]} : vector<8x256xf32> to vector<8x64xf32>
    %260 = math.tanh %259 : vector<8x64xf32>
    %261 = vector.extract_strided_slice %258 {offsets = [0, 0], sizes = [8, 64], strides = [1, 1]} : vector<8x192xf32> to vector<8x64xf32>
    %262 = vector.extract_strided_slice %258 {offsets = [0, 64], sizes = [8, 64], strides = [1, 1]} : vector<8x192xf32> to vector<8x64xf32>
    %263 = vector.extract_strided_slice %258 {offsets = [0, 128], sizes = [8, 64], strides = [1, 1]} : vector<8x192xf32> to vector<8x64xf32>
    %264 = arith.mulf %262, %223 : vector<8x64xf32>
    %265 = arith.mulf %261, %260 : vector<8x64xf32>
    %266 = arith.addf %264, %265 : vector<8x64xf32>
    %267 = math.tanh %266 : vector<8x64xf32>
    %268 = arith.mulf %263, %267 : vector<8x64xf32>
    %c6_i32 = arith.constant 6 : i32
    %c8_i32_69 = arith.constant 8 : i32
    %269 = arith.muli %c6_i32, %c8_i32_69 : i32
    %270 = tpu.assume_multiple %269, 8 : i32
    %271 = arith.index_cast %270 : i32 to index
    %c0_70 = arith.constant 0 : index
    %272 = vector.load %arg10[%271, %c0_70] : memref<64x256xf32, #tpu.memory_space<vmem>>, vector<8x256xf32>
    %c0_71 = arith.constant 0 : index
    %c0_72 = arith.constant 0 : index
    %273 = vector.load %arg3[%c0_71, %c0_72] : memref<64x256xf32, #tpu.memory_space<vmem>>, vector<64x256xf32>
    %cst_73 = arith.constant dense<0.000000e+00> : vector<8x256xf32>
    %274 = tpu.matmul %248, %273, %cst_73 {dimension_numbers = #tpu.dot_dimension_numbers<[1], [0], [0], [1], [0, 0, 1, 1], [], []>} : vector<8x64xf32>, vector<64x256xf32>, vector<8x256xf32> -> vector<8x256xf32>
    %275 = arith.addf %272, %274 : vector<8x256xf32>
    %276 = vector.extract_strided_slice %275 {offsets = [0, 0], sizes = [8, 192], strides = [1, 1]} : vector<8x256xf32> to vector<8x192xf32>
    %277 = arith.negf %276 : vector<8x192xf32>
    %278 = math.exp %277 : vector<8x192xf32>
    %cst_74 = arith.constant 1.000000e+00 : f32
    %279 = vector.broadcast %cst_74 : f32 to vector<8x192xf32>
    %280 = arith.addf %279, %278 : vector<8x192xf32>
    %281 = arith.divf %279, %280 : vector<8x192xf32>
    %282 = vector.extract_strided_slice %275 {offsets = [0, 192], sizes = [8, 64], strides = [1, 1]} : vector<8x256xf32> to vector<8x64xf32>
    %283 = math.tanh %282 : vector<8x64xf32>
    %284 = vector.extract_strided_slice %281 {offsets = [0, 0], sizes = [8, 64], strides = [1, 1]} : vector<8x192xf32> to vector<8x64xf32>
    %285 = vector.extract_strided_slice %281 {offsets = [0, 64], sizes = [8, 64], strides = [1, 1]} : vector<8x192xf32> to vector<8x64xf32>
    %286 = vector.extract_strided_slice %281 {offsets = [0, 128], sizes = [8, 64], strides = [1, 1]} : vector<8x192xf32> to vector<8x64xf32>
    %287 = arith.mulf %285, %246 : vector<8x64xf32>
    %288 = arith.mulf %284, %283 : vector<8x64xf32>
    %289 = arith.addf %287, %288 : vector<8x64xf32>
    %290 = math.tanh %289 : vector<8x64xf32>
    %291 = arith.mulf %286, %290 : vector<8x64xf32>
    %292 = tpu.concatenate %291, %268 in 1 : vector<8x64xf32>, vector<8x64xf32> -> vector<8x128xf32>
    %c0_75 = arith.constant 0 : index
    %c0_76 = arith.constant 0 : index
    %293 = vector.load %arg5[%c0_75, %c0_76] : memref<128x256xf32, #tpu.memory_space<vmem>>, vector<128x256xf32>
    %cst_77 = arith.constant dense<0.000000e+00> : vector<8x256xf32>
    %294 = tpu.matmul %292, %293, %cst_77 {dimension_numbers = #tpu.dot_dimension_numbers<[1], [0], [0], [1], [0, 0, 1, 1], [], []>} : vector<8x128xf32>, vector<128x256xf32>, vector<8x256xf32> -> vector<8x256xf32>
    %295 = arith.addf %294, %9 : vector<8x256xf32>
    %296 = vector.extract_strided_slice %295 {offsets = [0, 0], sizes = [8, 192], strides = [1, 1]} : vector<8x256xf32> to vector<8x192xf32>
    %297 = arith.negf %296 : vector<8x192xf32>
    %298 = math.exp %297 : vector<8x192xf32>
    %cst_78 = arith.constant 1.000000e+00 : f32
    %299 = vector.broadcast %cst_78 : f32 to vector<8x192xf32>
    %300 = arith.addf %299, %298 : vector<8x192xf32>
    %301 = arith.divf %299, %300 : vector<8x192xf32>
    %302 = vector.extract_strided_slice %295 {offsets = [0, 192], sizes = [8, 64], strides = [1, 1]} : vector<8x256xf32> to vector<8x64xf32>
    %303 = math.tanh %302 : vector<8x64xf32>
    %304 = vector.extract_strided_slice %301 {offsets = [0, 0], sizes = [8, 64], strides = [1, 1]} : vector<8x192xf32> to vector<8x64xf32>
    %305 = vector.extract_strided_slice %301 {offsets = [0, 64], sizes = [8, 64], strides = [1, 1]} : vector<8x192xf32> to vector<8x64xf32>
    %306 = vector.extract_strided_slice %301 {offsets = [0, 128], sizes = [8, 64], strides = [1, 1]} : vector<8x192xf32> to vector<8x64xf32>
    %307 = arith.mulf %305, %266 : vector<8x64xf32>
    %308 = arith.mulf %304, %303 : vector<8x64xf32>
    %309 = arith.addf %307, %308 : vector<8x64xf32>
    %310 = math.tanh %309 : vector<8x64xf32>
    %311 = arith.mulf %306, %310 : vector<8x64xf32>
    %c7_i32 = arith.constant 7 : i32
    %c8_i32_79 = arith.constant 8 : i32
    %312 = arith.muli %c7_i32, %c8_i32_79 : i32
    %313 = tpu.assume_multiple %312, 8 : i32
    %314 = arith.index_cast %313 : i32 to index
    %c0_80 = arith.constant 0 : index
    %315 = vector.load %arg10[%314, %c0_80] : memref<64x256xf32, #tpu.memory_space<vmem>>, vector<8x256xf32>
    %c0_81 = arith.constant 0 : index
    %c0_82 = arith.constant 0 : index
    %316 = vector.load %arg3[%c0_81, %c0_82] : memref<64x256xf32, #tpu.memory_space<vmem>>, vector<64x256xf32>
    %cst_83 = arith.constant dense<0.000000e+00> : vector<8x256xf32>
    %317 = tpu.matmul %291, %316, %cst_83 {dimension_numbers = #tpu.dot_dimension_numbers<[1], [0], [0], [1], [0, 0, 1, 1], [], []>} : vector<8x64xf32>, vector<64x256xf32>, vector<8x256xf32> -> vector<8x256xf32>
    %318 = arith.addf %315, %317 : vector<8x256xf32>
    %319 = vector.extract_strided_slice %318 {offsets = [0, 0], sizes = [8, 192], strides = [1, 1]} : vector<8x256xf32> to vector<8x192xf32>
    %320 = arith.negf %319 : vector<8x192xf32>
    %321 = math.exp %320 : vector<8x192xf32>
    %cst_84 = arith.constant 1.000000e+00 : f32
    %322 = vector.broadcast %cst_84 : f32 to vector<8x192xf32>
    %323 = arith.addf %322, %321 : vector<8x192xf32>
    %324 = arith.divf %322, %323 : vector<8x192xf32>
    %325 = vector.extract_strided_slice %318 {offsets = [0, 192], sizes = [8, 64], strides = [1, 1]} : vector<8x256xf32> to vector<8x64xf32>
    %326 = math.tanh %325 : vector<8x64xf32>
    %327 = vector.extract_strided_slice %324 {offsets = [0, 0], sizes = [8, 64], strides = [1, 1]} : vector<8x192xf32> to vector<8x64xf32>
    %328 = vector.extract_strided_slice %324 {offsets = [0, 64], sizes = [8, 64], strides = [1, 1]} : vector<8x192xf32> to vector<8x64xf32>
    %329 = vector.extract_strided_slice %324 {offsets = [0, 128], sizes = [8, 64], strides = [1, 1]} : vector<8x192xf32> to vector<8x64xf32>
    %330 = arith.mulf %328, %289 : vector<8x64xf32>
    %331 = arith.mulf %327, %326 : vector<8x64xf32>
    %332 = arith.addf %330, %331 : vector<8x64xf32>
    %333 = math.tanh %332 : vector<8x64xf32>
    %334 = arith.mulf %329, %333 : vector<8x64xf32>
    %335 = tpu.concatenate %334, %311 in 1 : vector<8x64xf32>, vector<8x64xf32> -> vector<8x128xf32>
    %c0_85 = arith.constant 0 : index
    %c0_86 = arith.constant 0 : index
    %336 = vector.load %arg5[%c0_85, %c0_86] : memref<128x256xf32, #tpu.memory_space<vmem>>, vector<128x256xf32>
    %cst_87 = arith.constant dense<0.000000e+00> : vector<8x256xf32>
    %337 = tpu.matmul %335, %336, %cst_87 {dimension_numbers = #tpu.dot_dimension_numbers<[1], [0], [0], [1], [0, 0, 1, 1], [], []>} : vector<8x128xf32>, vector<128x256xf32>, vector<8x256xf32> -> vector<8x256xf32>
    %338 = arith.addf %337, %9 : vector<8x256xf32>
    %339 = vector.extract_strided_slice %338 {offsets = [0, 0], sizes = [8, 192], strides = [1, 1]} : vector<8x256xf32> to vector<8x192xf32>
    %340 = arith.negf %339 : vector<8x192xf32>
    %341 = math.exp %340 : vector<8x192xf32>
    %cst_88 = arith.constant 1.000000e+00 : f32
    %342 = vector.broadcast %cst_88 : f32 to vector<8x192xf32>
    %343 = arith.addf %342, %341 : vector<8x192xf32>
    %344 = arith.divf %342, %343 : vector<8x192xf32>
    %345 = vector.extract_strided_slice %338 {offsets = [0, 192], sizes = [8, 64], strides = [1, 1]} : vector<8x256xf32> to vector<8x64xf32>
    %346 = math.tanh %345 : vector<8x64xf32>
    %347 = vector.extract_strided_slice %344 {offsets = [0, 0], sizes = [8, 64], strides = [1, 1]} : vector<8x192xf32> to vector<8x64xf32>
    %348 = vector.extract_strided_slice %344 {offsets = [0, 64], sizes = [8, 64], strides = [1, 1]} : vector<8x192xf32> to vector<8x64xf32>
    %349 = vector.extract_strided_slice %344 {offsets = [0, 128], sizes = [8, 64], strides = [1, 1]} : vector<8x192xf32> to vector<8x64xf32>
    %350 = arith.mulf %348, %309 : vector<8x64xf32>
    %351 = arith.mulf %347, %346 : vector<8x64xf32>
    %352 = arith.addf %350, %351 : vector<8x64xf32>
    %353 = math.tanh %352 : vector<8x64xf32>
    %354 = arith.mulf %349, %353 : vector<8x64xf32>
    %c8_i32_89 = arith.constant 8 : i32
    %c0_90 = arith.constant 0 : index
    %c0_91 = arith.constant 0 : index
    %355 = vector.load %arg7[%c0_90, %c0_91] : memref<64x10xf32, #tpu.memory_space<vmem>>, vector<64x10xf32>
    %cst_92 = arith.constant dense<0.000000e+00> : vector<8x10xf32>
    %356 = tpu.matmul %354, %355, %cst_92 {dimension_numbers = #tpu.dot_dimension_numbers<[1], [0], [0], [1], [0, 0, 1, 1], [], []>} : vector<8x64xf32>, vector<64x10xf32>, vector<8x10xf32> -> vector<8x10xf32>
    %c0_93 = arith.constant 0 : index
    %c0_94 = arith.constant 0 : index
    %357 = vector.load %arg8[%c0_93, %c0_94] : memref<1x10xf32, #tpu.memory_space<vmem>>, vector<1x10xf32>
    %358 = vector.broadcast %357 : vector<1x10xf32> to vector<8x10xf32>
    %359 = arith.addf %356, %358 : vector<8x10xf32>
    %c0_95 = arith.constant 0 : index
    %c0_96 = arith.constant 0 : index
    %360 = vector.load %arg9[%c0_95, %c0_96] : memref<8x10xf32, #tpu.memory_space<vmem>>, vector<8x10xf32>
    tpu.vector_store %arg9[%c0_95, %c0_96], %359 {strides = array<i32>} : memref<8x10xf32, #tpu.memory_space<vmem>>, vector<8x10xf32>,
    return
  }
  func.func @transform_0(%arg0: i32) -> (i32, i32) {
    %c0_i32 = arith.constant 0 : i32
    %c0_i32_0 = arith.constant 0 : i32
    %c0_i32_1 = arith.constant 0 : i32
    return %c0_i32, %c0_i32_0 : i32, i32
  }
  func.func @transform_1(%arg0: i32) -> (i32, i32) {
    %c0_i32 = arith.constant 0 : i32
    %c0_i32_0 = arith.constant 0 : i32
    %c0_i32_1 = arith.constant 0 : i32
    return %c0_i32, %c0_i32_0 : i32, i32
  }
  func.func @transform_2(%arg0: i32) -> (i32, i32) {
    %c0_i32 = arith.constant 0 : i32
    %c0_i32_0 = arith.constant 0 : i32
    %c0_i32_1 = arith.constant 0 : i32
    return %c0_i32, %c0_i32_0 : i32, i32
  }
  func.func @transform_3(%arg0: i32) -> (i32, i32) {
    %c0_i32 = arith.constant 0 : i32
    %c0_i32_0 = arith.constant 0 : i32
    %c0_i32_1 = arith.constant 0 : i32
    return %c0_i32, %c0_i32_0 : i32, i32
  }
  func.func @transform_4(%arg0: i32) -> (i32, i32) {
    %c0_i32 = arith.constant 0 : i32
    %c0_i32_0 = arith.constant 0 : i32
    %c0_i32_1 = arith.constant 0 : i32
    return %c0_i32, %c0_i32_0 : i32, i32
  }
  func.func @transform_5(%arg0: i32) -> (i32, i32) {
    %c0_i32 = arith.constant 0 : i32
    %c0_i32_0 = arith.constant 0 : i32
    %c0_i32_1 = arith.constant 0 : i32
    return %c0_i32, %c0_i32_0 : i32, i32
  }
  func.func @transform_6(%arg0: i32) -> (i32, i32) {
    %c0_i32 = arith.constant 0 : i32
    %c0_i32_0 = arith.constant 0 : i32
    %c0_i32_1 = arith.constant 0 : i32
    return %c0_i32, %c0_i32_0 : i32, i32
  }
  func.func @transform_7(%arg0: i32) -> (i32, i32) {
    %c0_i32 = arith.constant 0 : i32
    %c0_i32_0 = arith.constant 0 : i32
    %c0_i32_1 = arith.constant 0 : i32
    return %c0_i32, %c0_i32_0 : i32, i32
  }
  func.func @transform_8(%arg0: i32) -> (i32, i32) {
    %c0_i32 = arith.constant 0 : i32
    %c0_i32_0 = arith.constant 0 : i32
    %c0_i32_1 = arith.constant 0 : i32
    return %c0_i32, %c0_i32_0 : i32, i32
  }
}

</mosaic_0001>

<llo_original>
// kernel: rnn_forward.1
$region0: #{rnn_forward.1}
  #allocation0 [shape = 'u32[]', space=smem, size = 0x4, offset = 0x4, fixed_abs, tag = 'smem constant byte address 0x4 - core index']
  #allocation1 [shape = 'u32[144,128]{1,0:T(1,128)}', space=vmem, size = 0x12000, scoped, tag = 'internal scratch']
  #allocation2 [shape = 'f32[64,256]{1,0:T(8,128)}', space=vmem, size = 0x10000, scoped, tag = 'scratch operand']
  %s0 = inlined_call_operand.vmem [shape: f32[64,32], index: 0, kind: input, shape index: {}]
  %s1 = inlined_call_operand.hbm [shape: f32[32,256], index: 1, kind: input, shape index: {}]
  %s2 = inlined_call_operand.hbm [shape: f32[64,256], index: 2, kind: input, shape index: {}]
  %s3 = inlined_call_operand.vmem [shape: f32[1,256], index: 3, kind: input, shape index: {}]
  %s4 = inlined_call_operand.vmem [shape: f32[128,256], index: 4, kind: input, shape index: {}]
  %s5 = inlined_call_operand.vmem [shape: f32[1,256], index: 5, kind: input, shape index: {}]
  %s6 = inlined_call_operand.vmem [shape: f32[64,10], index: 6, kind: input, shape index: {}]
  %s7 = inlined_call_operand.vmem [shape: f32[1,10], index: 7, kind: input, shape index: {}]
  %s8 = inlined_call_operand.vmem [shape: f32[8,10], index: 8, kind: output, shape index: {}]
  %s9 = sld [smem:[#allocation0]]
  $region50: #{rnn_forward.1} parent=0
    _
  %s11 = ssub.s32 1, %s9
  %s12 = scalar_select 0, %s11, %s9
  $region1: #{rnn_forward.1} parent=0
    #allocation3 [shape = 'u8[32768]{0}', space=vmem, size = 0x8000, scoped, tag = 'input window, operand 1, single buffered']
    #allocation4 [shape = 's32[1]{0}', space=sflag, size = 0x4, scoped, tag = 'scoped memory for rnn_forward.1']
    #allocation5 [shape = 'u8[65536]{0}', space=vmem, size = 0x10000, scoped, tag = 'input window, operand 2, single buffered']
    #allocation6 [shape = 's32[1]{0}', space=sflag, size = 0x4, scoped, tag = 'scoped memory for rnn_forward.1']
    %13 = vsyncpa [#allocation4], 0
    %14 = vsyncpa [#allocation6], 0
    // Predicated region
    $region2: #{rnn_forward.1} parent=1 // pred_check
      _
    $region3: #{rnn_forward.1} parent=1 // pred_check_branch
      %16 = sbr.rel (0) target = $region5
    $region4: #{rnn_forward.1} parent=1 // pred_region
      _
    $region5: #{rnn_forward.1} parent=1 // pred_fallthru
      _
    // Predicated region
    $region6: #{rnn_forward.1} parent=1 // pred_check
      _
    $region7: #{rnn_forward.1} parent=1 // pred_check_branch
      %18 = sbr.rel (0) target = $region9
    $region8: #{rnn_forward.1} parent=1 // pred_region
      %s20 = ssub.s32 1024, 1024
      %21 = vsyncadd [#allocation4], %s20
      %s22 = sshll.u32 [#allocation3], 4
      %s23 = int_to_ptr.vmem [resolvable:$true] %s22
      %28 = dma.hbm_to_vmem [thread:$0]  %s1, 1024, %s23, [#allocation4], 256, 256, 16
    $region9: #{rnn_forward.1} parent=1 // pred_fallthru
      _
    // Predicated region
    $region10: #{rnn_forward.1} parent=1 // pred_check
      _
    $region11: #{rnn_forward.1} parent=1 // pred_check_branch
      %30 = sbr.rel (0) target = $region13
    $region12: #{rnn_forward.1} parent=1 // pred_region
      %s32 = ssub.s32 2048, 2048
      %33 = vsyncadd [#allocation6], %s32
      %s34 = sshll.u32 [#allocation5], 4
      %s35 = int_to_ptr.vmem [resolvable:$true] %s34
      %40 = dma.hbm_to_vmem [thread:$0]  %s2, 2048, %s35, [#allocation6], 256, 256, 16
    $region13: #{rnn_forward.1} parent=1 // pred_fallthru
      _
    // Predicated region
    $region14: #{rnn_forward.1} parent=1 // pred_check
      _
    $region15: #{rnn_forward.1} parent=1 // pred_check_branch
      %42 = sbr.rel (0) target = $region17
    $region16: #{rnn_forward.1} parent=1 // pred_region
      _
    $region17: #{rnn_forward.1} parent=1 // pred_fallthru
      _
    // Predicated region
    $region18: #{rnn_forward.1} parent=1 // pred_check
      _
    $region19: #{rnn_forward.1} parent=1 // pred_check_branch
      %44 = sbr.rel (0) target = $region21
    $region20: #{rnn_forward.1} parent=1 // pred_region
      _
    $region21: #{rnn_forward.1} parent=1 // pred_fallthru
      _
    // Predicated region
    $region22: #{rnn_forward.1} parent=1 // pred_check
      _
    $region23: #{rnn_forward.1} parent=1 // pred_check_branch
      %46 = sbr.rel (0) target = $region25
    $region24: #{rnn_forward.1} parent=1 // pred_region
      _
    $region25: #{rnn_forward.1} parent=1 // pred_fallthru
      _
    // Predicated region
    $region26: #{rnn_forward.1} parent=1 // pred_check
      _
    $region27: #{rnn_forward.1} parent=1 // pred_check_branch
      %48 = sbr.rel (0) target = $region29
    $region28: #{rnn_forward.1} parent=1 // pred_region
      _
    $region29: #{rnn_forward.1} parent=1 // pred_fallthru
      _
    // Predicated region
    $region30: #{rnn_forward.1} parent=1 // pred_check
      _
    $region31: #{rnn_forward.1} parent=1 // pred_check_branch
      %50 = sbr.rel (0) target = $region33
    $region32: #{rnn_forward.1} parent=1 // pred_region
      _
    $region33: #{rnn_forward.1} parent=1 // pred_fallthru
      _
    // Predicated region
    $region34: #{rnn_forward.1} parent=1 // pred_check
      _
    $region35: #{rnn_forward.1} parent=1 // pred_check_branch
      %52 = sbr.rel (0) target = $region37
    $region36: #{rnn_forward.1} parent=1 // pred_region
      %53 = dma.done [#allocation4], 1024
    $region37: #{rnn_forward.1} parent=1 // pred_fallthru
      _
    // Predicated region
    $region38: #{rnn_forward.1} parent=1 // pred_check
      _
    $region39: #{rnn_forward.1} parent=1 // pred_check_branch
      %55 = sbr.rel (0) target = $region41
    $region40: #{rnn_forward.1} parent=1 // pred_region
      %56 = dma.done [#allocation6], 2048
    $region41: #{rnn_forward.1} parent=1 // pred_fallthru
      _
    %v57 = vld [vmem:[%s0] sm:$0xff]
    %v58 = vld [vmem:[%s0 + $0x8] sm:$0xff]
    %v59 = vld [vmem:[%s0 + $0x10] sm:$0xff]
    %v60 = vld [vmem:[%s0 + $0x18] sm:$0xff]
    %v61 = vld [vmem:[%s0 + $0x20] sm:$0xff]
    %v62 = vld [vmem:[%s0 + $0x28] sm:$0xff]
    %v63 = vld [vmem:[%s0 + $0x30] sm:$0xff]
    %v64 = vld [vmem:[%s0 + $0x38] sm:$0xff]
    %v65 = vld [vmem:[#allocation3] sm:$0xff]
    %v66 = vld [vmem:[#allocation3 + $0x8] sm:$0xff]
    %v67 = vld [vmem:[#allocation3 + $0x10] sm:$0xff]
    %v68 = vld [vmem:[#allocation3 + $0x18] sm:$0xff]
    %v69 = vld [vmem:[#allocation3 + $0x20] sm:$0xff]
    %v70 = vld [vmem:[#allocation3 + $0x28] sm:$0xff]
    %v71 = vld [vmem:[#allocation3 + $0x30] sm:$0xff]
    %v72 = vld [vmem:[#allocation3 + $0x38] sm:$0xff]
    %v73 = vld [vmem:[%s3] sm:$0x3]
    %v75 = vlaneseq
    %v76 = vshrl.u32 %v75, 7
    %v77 = vsub.s32 0, %v76
    %v78 = vrot.slane %v73, %v77
    %v79 = vlaneseq
    %v80 = vshrl.u32 %v79, 7
    %v81 = vsub.s32 1, %v80
    %v82 = vrot.slane %v73, %v81
    %vm85 = vcmask 261120
    %v87 = vsel %vm85, %v57, 0
    %v90 = vsel %vm85, %v58, 0
    %v93 = vsel %vm85, %v59, 0
    %v96 = vsel %vm85, %v60, 0
    %v99 = vsel %vm85, %v61, 0
    %v102 = vsel %vm85, %v62, 0
    %v105 = vsel %vm85, %v63, 0
    %v108 = vsel %vm85, %v64, 0
    %110 = vmatprep.subr.mxu0 0.0
    %111 = vmatpush1.msra.mxu0 0.0
    %112 = vmatprep.subr.mxu0 0.0
    %113 = vmatpush1.msra.mxu0 0.0
    %114 = vmatprep.subr.mxu0 0.0
    %115 = vmatpush1.msra.mxu0 0.0
    %116 = vmatprep.subr.mxu0 0.0
    %117 = vmatpush1.msra.mxu0 0.0
    %118 = vmatprep.subr.mxu0 0.0
    %119 = vmatpush1.msra.mxu0 0.0
    %120 = vmatprep.subr.mxu0 0.0
    %121 = vmatpush1.msra.mxu0 0.0
    %122 = vmatprep.subr.mxu0 0.0
    %123 = vmatpush1.msra.mxu0 0.0
    %124 = vmatprep.subr.mxu0 0.0
    %125 = vmatpush1.msra.mxu0 0.0
    %126 = vmatprep.subr.mxu0 0.0
    %127 = vmatpush1.msra.mxu0 0.0
    %128 = vmatprep.subr.mxu0 0.0
    %129 = vmatpush1.msra.mxu0 0.0
    %130 = vmatprep.subr.mxu0 0.0
    %131 = vmatpush1.msra.mxu0 0.0
    %132 = vmatprep.subr.mxu0 0.0
    %133 = vmatpush1.msra.mxu0 0.0
    %134 = vmatprep.subr.mxu0 %v72
    %135 = vmatpush1.msra.mxu0 %v71
    %136 = vmatprep.subr.mxu0 %v70
    %137 = vmatpush1.msra.mxu0 %v69
    %138 = vmatprep.subr.mxu0 %v68
    %139 = vmatpush1.msra.mxu0 %v67
    %140 = vmatprep.subr.mxu0 %v66
    %141 = vmatpush1.msra.mxu0 %v65
    %142 = vmatprep.subr.mxu0 0.0
    %143 = vmatpush2.msra.mxu0 0.0
    %144 = vmatprep.subr.mxu0 0.0
    %145 = vmatpush2.msra.mxu0 0.0
    %146 = vmatprep.subr.mxu0 0.0
    %147 = vmatpush2.msra.mxu0 0.0
    %148 = vmatprep.subr.mxu0 0.0
    %149 = vmatpush2.msra.mxu0 0.0
    %150 = vmatprep.subr.mxu0 0.0
    %151 = vmatpush2.msra.mxu0 0.0
    %152 = vmatprep.subr.mxu0 0.0
    %153 = vmatpush2.msra.mxu0 0.0
    %154 = vmatprep.subr.mxu0 0.0
    %155 = vmatpush2.msra.mxu0 0.0
    %156 = vmatprep.subr.mxu0 0.0
    %157 = vmatpush2.msra.mxu0 0.0
    %158 = vmatprep.subr.mxu0 0.0
    %159 = vmatpush2.msra.mxu0 0.0
    %160 = vmatprep.subr.mxu0 0.0
    %161 = vmatpush2.msra.mxu0 0.0
    %162 = vmatprep.subr.mxu0 0.0
    %163 = vmatpush2.msra.mxu0 0.0
    %164 = vmatprep.subr.mxu0 0.0
    %165 = vmatpush2.msra.mxu0 0.0
    %166 = vmatprep.subr.mxu0 0.0
    %167 = vmatpush2.msra.mxu0 0.0
    %168 = vmatprep.subr.mxu0 0.0
    %169 = vmatpush2.msra.mxu0 0.0
    %170 = vmatprep.subr.mxu0 0.0
    %171 = vmatpush2.msra.mxu0 0.0
    %172 = vmatprep.subr.mxu0 0.0
    %173 = vmatpush2.msra.mxu0 0.0
    %174 = vmatprep.mubr.f32.mxu0 0.0
    %175 = vmatmul.mubr.f32.gmra.mxu0 %v87
    %v176 = vpop.f32.mrf.mxu0
    %v177 = vadd.f32 %v78, %v176
    %v178 = vpop.f32.mrf.mxu0
    %v179 = vadd.f32 %v82, %v178
    %180 = vmatprep.mubr.f32.mxu0 0.0
    %181 = vmatmul.mubr.f32.gmra.mxu0 %v90
    %v182 = vpop.f32.mrf.mxu0
    %v183 = vadd.f32 %v78, %v182
    %v184 = vpop.f32.mrf.mxu0
    %v185 = vadd.f32 %v82, %v184
    %186 = vmatprep.mubr.f32.mxu0 0.0
    %187 = vmatmul.mubr.f32.gmra.mxu0 %v93
    %v188 = vpop.f32.mrf.mxu0
    %v189 = vadd.f32 %v78, %v188
    %v190 = vpop.f32.mrf.mxu0
    %v191 = vadd.f32 %v82, %v190
    %192 = vmatprep.mubr.f32.mxu0 0.0
    %193 = vmatmul.mubr.f32.gmra.mxu0 %v96
    %v194 = vpop.f32.mrf.mxu0
    %v195 = vadd.f32 %v78, %v194
    %v196 = vpop.f32.mrf.mxu0
    %v197 = vadd.f32 %v82, %v196
    %198 = vmatprep.mubr.f32.mxu0 0.0
    %199 = vmatmul.mubr.f32.gmra.mxu0 %v99
    %v200 = vpop.f32.mrf.mxu0
    %v201 = vadd.f32 %v78, %v200
    %v202 = vpop.f32.mrf.mxu0
    %v203 = vadd.f32 %v82, %v202
    %204 = vmatprep.mubr.f32.mxu0 0.0
    %205 = vmatmul.mubr.f32.gmra.mxu0 %v102
    %v206 = vpop.f32.mrf.mxu0
    %v207 = vadd.f32 %v78, %v206
    %v208 = vpop.f32.mrf.mxu0
    %v209 = vadd.f32 %v82, %v208
    %210 = vmatprep.mubr.f32.mxu0 0.0
    %211 = vmatmul.mubr.f32.gmra.mxu0 %v105
    %v212 = vpop.f32.mrf.mxu0
    %v213 = vadd.f32 %v78, %v212
    %v214 = vpop.f32.mrf.mxu0
    %v215 = vadd.f32 %v82, %v214
    %216 = vmatprep.mubr.f32.mxu0 0.0
    %217 = vmatmul.mubr.f32.gmra.mxu0 %v108
    %v218 = vpop.f32.mrf.mxu0
    %v219 = vadd.f32 %v78, %v218
    %v220 = vpop.f32.mrf.mxu0
    %v221 = vadd.f32 %v82, %v220
    %222 = vdwg.mxu0
    %223 = vst [vmem:[#allocation2] sm:$0xff] %v177
    %224 = vst [vmem:[#allocation2 + $0x8] sm:$0xff] %v179
    %225 = vst [vmem:[#allocation2 + $0x10] sm:$0xff] %v183
    %226 = vst [vmem:[#allocation2 + $0x18] sm:$0xff] %v185
    %227 = vst [vmem:[#allocation2 + $0x20] sm:$0xff] %v189
    %228 = vst [vmem:[#allocation2 + $0x28] sm:$0xff] %v191
    %229 = vst [vmem:[#allocation2 + $0x30] sm:$0xff] %v195
    %230 = vst [vmem:[#allocation2 + $0x38] sm:$0xff] %v197
    %231 = vst [vmem:[#allocation2 + $0x40] sm:$0xff] %v201
    %232 = vst [vmem:[#allocation2 + $0x48] sm:$0xff] %v203
    %233 = vst [vmem:[#allocation2 + $0x50] sm:$0xff] %v207
    %234 = vst [vmem:[#allocation2 + $0x58] sm:$0xff] %v209
    %235 = vst [vmem:[#allocation2 + $0x60] sm:$0xff] %v213
    %236 = vst [vmem:[#allocation2 + $0x68] sm:$0xff] %v215
    %237 = vst [vmem:[#allocation2 + $0x70] sm:$0xff] %v219
    %238 = vst [vmem:[#allocation2 + $0x78] sm:$0xff] %v221
    %v239 = vld [vmem:[%s5] sm:$0x3]
    %v241 = vlaneseq
    %v242 = vshrl.u32 %v241, 7
    %v243 = vsub.s32 0, %v242
    %v244 = vrot.slane %v239, %v243
    %v245 = vlaneseq
    %v246 = vshrl.u32 %v245, 7
    %v247 = vsub.s32 1, %v246
    %v248 = vrot.slane %v239, %v247
    %s251 = smul.u32 0, 2
    %s252 = smul.addr %s251, 8
    %s253 = scalar_lea.vmem [#allocation2], %s252
    %v254 = vld [vmem:[%s253] sm:$0xff]
    %v255 = vld [vmem:[%s253 + $0x8] sm:$0xff]
    %v256 = vld [vmem:[#allocation5] sm:$0xff]
    %v257 = vld [vmem:[#allocation5 + $0x8] sm:$0xff]
    %v258 = vld [vmem:[#allocation5 + $0x10] sm:$0xff]
    %v259 = vld [vmem:[#allocation5 + $0x18] sm:$0xff]
    %v260 = vld [vmem:[#allocation5 + $0x20] sm:$0xff]
    %v261 = vld [vmem:[#allocation5 + $0x28] sm:$0xff]
    %v262 = vld [vmem:[#allocation5 + $0x30] sm:$0xff]
    %v263 = vld [vmem:[#allocation5 + $0x38] sm:$0xff]
    %v264 = vld [vmem:[#allocation5 + $0x40] sm:$0xff]
    %v265 = vld [vmem:[#allocation5 + $0x48] sm:$0xff]
    %v266 = vld [vmem:[#allocation5 + $0x50] sm:$0xff]
    %v267 = vld [vmem:[#allocation5 + $0x58] sm:$0xff]
    %v268 = vld [vmem:[#allocation5 + $0x60] sm:$0xff]
    %v269 = vld [vmem:[#allocation5 + $0x68] sm:$0xff]
    %v270 = vld [vmem:[#allocation5 + $0x70] sm:$0xff]
    %v271 = vld [vmem:[#allocation5 + $0x78] sm:$0xff]
    %vm272 = vcmask 523264
    %v274 = vsel %vm272, 0.0, 0
    %276 = vmatprep.subr.mxu0 0.0
    %277 = vmatpush1.msra.mxu0 0.0
    %278 = vmatprep.subr.mxu0 0.0
    %279 = vmatpush1.msra.mxu0 0.0
    %280 = vmatprep.subr.mxu0 0.0
    %281 = vmatpush1.msra.mxu0 0.0
    %282 = vmatprep.subr.mxu0 0.0
    %283 = vmatpush1.msra.mxu0 0.0
    %284 = vmatprep.subr.mxu0 0.0
    %285 = vmatpush1.msra.mxu0 0.0
    %286 = vmatprep.subr.mxu0 0.0
    %287 = vmatpush1.msra.mxu0 0.0
    %288 = vmatprep.subr.mxu0 0.0
    %289 = vmatpush1.msra.mxu0 0.0
    %290 = vmatprep.subr.mxu0 0.0
    %291 = vmatpush1.msra.mxu0 0.0
    %292 = vmatprep.subr.mxu0 %v271
    %293 = vmatpush1.msra.mxu0 %v270
    %294 = vmatprep.subr.mxu0 %v269
    %295 = vmatpush1.msra.mxu0 %v268
    %296 = vmatprep.subr.mxu0 %v267
    %297 = vmatpush1.msra.mxu0 %v266
    %298 = vmatprep.subr.mxu0 %v265
    %299 = vmatpush1.msra.mxu0 %v264
    %300 = vmatprep.subr.mxu0 %v263
    %301 = vmatpush1.msra.mxu0 %v262
    %302 = vmatprep.subr.mxu0 %v261
    %303 = vmatpush1.msra.mxu0 %v260
    %304 = vmatprep.subr.mxu0 %v259
    %305 = vmatpush1.msra.mxu0 %v258
    %306 = vmatprep.subr.mxu0 %v257
    %307 = vmatpush1.msra.mxu0 %v256
    %308 = vmatprep.subr.mxu0 0.0
    %309 = vmatpush2.msra.mxu0 0.0
    %310 = vmatprep.subr.mxu0 0.0
    %311 = vmatpush2.msra.mxu0 0.0
    %312 = vmatprep.subr.mxu0 0.0
    %313 = vmatpush2.msra.mxu0 0.0
    %314 = vmatprep.subr.mxu0 0.0
    %315 = vmatpush2.msra.mxu0 0.0
    %316 = vmatprep.subr.mxu0 0.0
    %317 = vmatpush2.msra.mxu0 0.0
    %318 = vmatprep.subr.mxu0 0.0
    %319 = vmatpush2.msra.mxu0 0.0
    %320 = vmatprep.subr.mxu0 0.0
    %321 = vmatpush2.msra.mxu0 0.0
    %322 = vmatprep.subr.mxu0 0.0
    %323 = vmatpush2.msra.mxu0 0.0
    %324 = vmatprep.subr.mxu0 0.0
    %325 = vmatpush2.msra.mxu0 0.0
    %326 = vmatprep.subr.mxu0 0.0
    %327 = vmatpush2.msra.mxu0 0.0
    %328 = vmatprep.subr.mxu0 0.0
    %329 = vmatpush2.msra.mxu0 0.0
    %330 = vmatprep.subr.mxu0 0.0
    %331 = vmatpush2.msra.mxu0 0.0
    %332 = vmatprep.subr.mxu0 0.0
    %333 = vmatpush2.msra.mxu0 0.0
    %334 = vmatprep.subr.mxu0 0.0
    %335 = vmatpush2.msra.mxu0 0.0
    %336 = vmatprep.subr.mxu0 0.0
    %337 = vmatpush2.msra.mxu0 0.0
    %338 = vmatprep.subr.mxu0 0.0
    %339 = vmatpush2.msra.mxu0 0.0
    %340 = vmatprep.mubr.f32.mxu0 0.0
    %341 = vmatmul.mubr.f32.gmra.mxu0 %v274
    %v342 = vpop.f32.mrf.mxu0
    %v343 = vadd.f32 0.0, %v342
    %v344 = vpop.f32.mrf.mxu0
    %v345 = vadd.f32 0.0, %v344
    %346 = vdwg.mxu0
    %v347 = vadd.f32 %v254, %v343
    %v348 = vadd.f32 %v255, %v345
    %v349 = vxor.u32 %v347, 2147483648
    %v350 = vxor.u32 %v348, 2147483648
    %v351 = vmul.f32 %v349, 1.442695
    %v352 = vpow.pop %v351
    %v353 = vmul.f32 %v350, 1.442695
    %v354 = vpow.pop %v353
    %v355 = vadd.f32 %v352, 1.0
    %v356 = vadd.f32 %v354, 1.0
    %v357 = vrcp.pop %v355
    %v358 = vmul.f32 1.0, %v357
    %v359 = vrcp.pop %v356
    %v360 = vmul.f32 1.0, %v359
    %v361 = vtanh.pop %v348
    %v362 = vmul.f32 %v358, 0.0
    %364 = vrot.lane.b32.xlu0 %v361, 64
    %v365 = vpop.permute.xlu0 %364
    %v367 = vmul.f32 %v358, %v365
    %369 = vrot.lane.b32.xlu0 %v367, 64
    %v370 = vpop.permute.xlu0 %369
    %v372 = vadd.f32 %v362, %v370
    %v373 = vtanh.pop %v372
    %375 = vrot.lane.b32.xlu0 %v373, 64
    %v376 = vpop.permute.xlu0 %375
    %v378 = vmul.f32 %v360, %v376
    %v379 = vsel %vm272, %v378, 0.0
    %v380 = vld [vmem:[%s4] sm:$0xff]
    %v381 = vld [vmem:[%s4 + $0x8] sm:$0xff]
    %v382 = vld [vmem:[%s4 + $0x10] sm:$0xff]
    %v383 = vld [vmem:[%s4 + $0x18] sm:$0xff]
    %v384 = vld [vmem:[%s4 + $0x20] sm:$0xff]
    %v385 = vld [vmem:[%s4 + $0x28] sm:$0xff]
    %v386 = vld [vmem:[%s4 + $0x30] sm:$0xff]
    %v387 = vld [vmem:[%s4 + $0x38] sm:$0xff]
    %v388 = vld [vmem:[%s4 + $0x40] sm:$0xff]
    %v389 = vld [vmem:[%s4 + $0x48] sm:$0xff]
    %v390 = vld [vmem:[%s4 + $0x50] sm:$0xff]
    %v391 = vld [vmem:[%s4 + $0x58] sm:$0xff]
    %v392 = vld [vmem:[%s4 + $0x60] sm:$0xff]
    %v393 = vld [vmem:[%s4 + $0x68] sm:$0xff]
    %v394 = vld [vmem:[%s4 + $0x70] sm:$0xff]
    %v395 = vld [vmem:[%s4 + $0x78] sm:$0xff]
    %v396 = vld [vmem:[%s4 + $0x80] sm:$0xff]
    %v397 = vld [vmem:[%s4 + $0x88] sm:$0xff]
    %v398 = vld [vmem:[%s4 + $0x90] sm:$0xff]
    %v399 = vld [vmem:[%s4 + $0x98] sm:$0xff]
    %v400 = vld [vmem:[%s4 + $0xa0] sm:$0xff]
    %v401 = vld [vmem:[%s4 + $0xa8] sm:$0xff]
    %v402 = vld [vmem:[%s4 + $0xb0] sm:$0xff]
    %v403 = vld [vmem:[%s4 + $0xb8] sm:$0xff]
    %v404 = vld [vmem:[%s4 + $0xc0] sm:$0xff]
    %v405 = vld [vmem:[%s4 + $0xc8] sm:$0xff]
    %v406 = vld [vmem:[%s4 + $0xd0] sm:$0xff]
    %v407 = vld [vmem:[%s4 + $0xd8] sm:$0xff]
    %v408 = vld [vmem:[%s4 + $0xe0] sm:$0xff]
    %v409 = vld [vmem:[%s4 + $0xe8] sm:$0xff]
    %v410 = vld [vmem:[%s4 + $0xf0] sm:$0xff]
    %v411 = vld [vmem:[%s4 + $0xf8] sm:$0xff]
    %412 = vmatprep.subr.mxu0 %v411
    %413 = vmatpush1.msra.mxu0 %v410
    %414 = vmatprep.subr.mxu0 %v409
    %415 = vmatpush1.msra.mxu0 %v408
    %416 = vmatprep.subr.mxu0 %v407
    %417 = vmatpush1.msra.mxu0 %v406
    %418 = vmatprep.subr.mxu0 %v405
    %419 = vmatpush1.msra.mxu0 %v404
    %420 = vmatprep.subr.mxu0 %v403
    %421 = vmatpush1.msra.mxu0 %v402
    %422 = vmatprep.subr.mxu0 %v401
    %423 = vmatpush1.msra.mxu0 %v400
    %424 = vmatprep.subr.mxu0 %v399
    %425 = vmatpush1.msra.mxu0 %v398
    %426 = vmatprep.subr.mxu0 %v397
    %427 = vmatpush1.msra.mxu0 %v396
    %428 = vmatprep.subr.mxu0 %v395
    %429 = vmatpush1.msra.mxu0 %v394
    %430 = vmatprep.subr.mxu0 %v393
    %431 = vmatpush1.msra.mxu0 %v392
    %432 = vmatprep.subr.mxu0 %v391
    %433 = vmatpush1.msra.mxu0 %v390
    %434 = vmatprep.subr.mxu0 %v389
    %435 = vmatpush1.msra.mxu0 %v388
    %436 = vmatprep.subr.mxu0 %v387
    %437 = vmatpush1.msra.mxu0 %v386
    %438 = vmatprep.subr.mxu0 %v385
    %439 = vmatpush1.msra.mxu0 %v384
    %440 = vmatprep.subr.mxu0 %v383
    %441 = vmatpush1.msra.mxu0 %v382
    %442 = vmatprep.subr.mxu0 %v381
    %443 = vmatpush1.msra.mxu0 %v380
    %444 = vmatprep.subr.mxu0 0.0
    %445 = vmatpush2.msra.mxu0 0.0
    %446 = vmatprep.subr.mxu0 0.0
    %447 = vmatpush2.msra.mxu0 0.0
    %448 = vmatprep.subr.mxu0 0.0
    %449 = vmatpush2.msra.mxu0 0.0
    %450 = vmatprep.subr.mxu0 0.0
    %451 = vmatpush2.msra.mxu0 0.0
    %452 = vmatprep.subr.mxu0 0.0
    %453 = vmatpush2.msra.mxu0 0.0
    %454 = vmatprep.subr.mxu0 0.0
    %455 = vmatpush2.msra.mxu0 0.0
    %456 = vmatprep.subr.mxu0 0.0
    %457 = vmatpush2.msra.mxu0 0.0
    %458 = vmatprep.subr.mxu0 0.0
    %459 = vmatpush2.msra.mxu0 0.0
    %460 = vmatprep.subr.mxu0 0.0
    %461 = vmatpush2.msra.mxu0 0.0
    %462 = vmatprep.subr.mxu0 0.0
    %463 = vmatpush2.msra.mxu0 0.0
    %464 = vmatprep.subr.mxu0 0.0
    %465 = vmatpush2.msra.mxu0 0.0
    %466 = vmatprep.subr.mxu0 0.0
    %467 = vmatpush2.msra.mxu0 0.0
    %468 = vmatprep.subr.mxu0 0.0
    %469 = vmatpush2.msra.mxu0 0.0
    %470 = vmatprep.subr.mxu0 0.0
    %471 = vmatpush2.msra.mxu0 0.0
    %472 = vmatprep.subr.mxu0 0.0
    %473 = vmatpush2.msra.mxu0 0.0
    %474 = vmatprep.subr.mxu0 0.0
    %475 = vmatpush2.msra.mxu0 0.0
    %476 = vmatprep.mubr.f32.mxu0 0.0
    %477 = vmatmul.mubr.f32.gmra.mxu0 %v379
    %v478 = vpop.f32.mrf.mxu0
    %v479 = vadd.f32 %v244, %v478
    %v480 = vpop.f32.mrf.mxu0
    %v481 = vadd.f32 %v248, %v480
    %482 = vdwg.mxu0
    %v483 = vxor.u32 %v479, 2147483648
    %v484 = vxor.u32 %v481, 2147483648
    %v485 = vmul.f32 %v483, 1.442695
    %v486 = vpow.pop %v485
    %v487 = vmul.f32 %v484, 1.442695
    %v488 = vpow.pop %v487
    %v489 = vadd.f32 %v486, 1.0
    %v490 = vadd.f32 %v488, 1.0
    %v491 = vrcp.pop %v489
    %v492 = vmul.f32 1.0, %v491
    %v493 = vrcp.pop %v490
    %v494 = vmul.f32 1.0, %v493
    %v495 = vtanh.pop %v481
    %v496 = vmul.f32 %v492, 0.0
    %498 = vrot.lane.b32.xlu0 %v495, 64
    %v499 = vpop.permute.xlu0 %498
    %v501 = vmul.f32 %v492, %v499
    %503 = vrot.lane.b32.xlu0 %v501, 64
    %v504 = vpop.permute.xlu0 %503
    %v506 = vadd.f32 %v496, %v504
    %v507 = vtanh.pop %v506
    %509 = vrot.lane.b32.xlu0 %v507, 64
    %v510 = vpop.permute.xlu0 %509
    %v512 = vmul.f32 %v494, %v510
    %s513 = smul.u32 1, 2
    %s514 = smul.addr %s513, 8
    %s515 = scalar_lea.vmem [#allocation2], %s514
    %v516 = vld [vmem:[%s515] sm:$0xff]
    %v517 = vld [vmem:[%s515 + $0x8] sm:$0xff]
    %v519 = vsel %vm272, %v378, 0
    %521 = vmatprep.subr.mxu0 0.0
    %522 = vmatpush1.msra.mxu0 0.0
    %523 = vmatprep.subr.mxu0 0.0
    %524 = vmatpush1.msra.mxu0 0.0
    %525 = vmatprep.subr.mxu0 0.0
    %526 = vmatpush1.msra.mxu0 0.0
    %527 = vmatprep.subr.mxu0 0.0
    %528 = vmatpush1.msra.mxu0 0.0
    %529 = vmatprep.subr.mxu0 0.0
    %530 = vmatpush1.msra.mxu0 0.0
    %531 = vmatprep.subr.mxu0 0.0
    %532 = vmatpush1.msra.mxu0 0.0
    %533 = vmatprep.subr.mxu0 0.0
    %534 = vmatpush1.msra.mxu0 0.0
    %535 = vmatprep.subr.mxu0 0.0
    %536 = vmatpush1.msra.mxu0 0.0
    %537 = vmatprep.subr.mxu0 %v271
    %538 = vmatpush1.msra.mxu0 %v270
    %539 = vmatprep.subr.mxu0 %v269
    %540 = vmatpush1.msra.mxu0 %v268
    %541 = vmatprep.subr.mxu0 %v267
    %542 = vmatpush1.msra.mxu0 %v266
    %543 = vmatprep.subr.mxu0 %v265
    %544 = vmatpush1.msra.mxu0 %v264
    %545 = vmatprep.subr.mxu0 %v263
    %546 = vmatpush1.msra.mxu0 %v262
    %547 = vmatprep.subr.mxu0 %v261
    %548 = vmatpush1.msra.mxu0 %v260
    %549 = vmatprep.subr.mxu0 %v259
    %550 = vmatpush1.msra.mxu0 %v258
    %551 = vmatprep.subr.mxu0 %v257
    %552 = vmatpush1.msra.mxu0 %v256
    %553 = vmatprep.subr.mxu0 0.0
    %554 = vmatpush2.msra.mxu0 0.0
    %555 = vmatprep.subr.mxu0 0.0
    %556 = vmatpush2.msra.mxu0 0.0
    %557 = vmatprep.subr.mxu0 0.0
    %558 = vmatpush2.msra.mxu0 0.0
    %559 = vmatprep.subr.mxu0 0.0
    %560 = vmatpush2.msra.mxu0 0.0
    %561 = vmatprep.subr.mxu0 0.0
    %562 = vmatpush2.msra.mxu0 0.0
    %563 = vmatprep.subr.mxu0 0.0
    %564 = vmatpush2.msra.mxu0 0.0
    %565 = vmatprep.subr.mxu0 0.0
    %566 = vmatpush2.msra.mxu0 0.0
    %567 = vmatprep.subr.mxu0 0.0
    %568 = vmatpush2.msra.mxu0 0.0
    %569 = vmatprep.subr.mxu0 0.0
    %570 = vmatpush2.msra.mxu0 0.0
    %571 = vmatprep.subr.mxu0 0.0
    %572 = vmatpush2.msra.mxu0 0.0
    %573 = vmatprep.subr.mxu0 0.0
    %574 = vmatpush2.msra.mxu0 0.0
    %575 = vmatprep.subr.mxu0 0.0
    %576 = vmatpush2.msra.mxu0 0.0
    %577 = vmatprep.subr.mxu0 0.0
    %578 = vmatpush2.msra.mxu0 0.0
    %579 = vmatprep.subr.mxu0 0.0
    %580 = vmatpush2.msra.mxu0 0.0
    %581 = vmatprep.subr.mxu0 0.0
    %582 = vmatpush2.msra.mxu0 0.0
    %583 = vmatprep.subr.mxu0 0.0
    %584 = vmatpush2.msra.mxu0 0.0
    %585 = vmatprep.mubr.f32.mxu0 0.0
    %586 = vmatmul.mubr.f32.gmra.mxu0 %v519
    %v587 = vpop.f32.mrf.mxu0
    %v588 = vadd.f32 0.0, %v587
    %v589 = vpop.f32.mrf.mxu0
    %v590 = vadd.f32 0.0, %v589
    %591 = vdwg.mxu0
    %v592 = vadd.f32 %v516, %v588
    %v593 = vadd.f32 %v517, %v590
    %v594 = vxor.u32 %v592, 2147483648
    %v595 = vxor.u32 %v593, 2147483648
    %v596 = vmul.f32 %v594, 1.442695
    %v597 = vpow.pop %v596
    %v598 = vmul.f32 %v595, 1.442695
    %v599 = vpow.pop %v598
    %v600 = vadd.f32 %v597, 1.0
    %v601 = vadd.f32 %v599, 1.0
    %v602 = vrcp.pop %v600
    %v603 = vmul.f32 1.0, %v602
    %v604 = vrcp.pop %v601
    %v605 = vmul.f32 1.0, %v604
    %v606 = vtanh.pop %v593
    %v607 = vmul.f32 %v603, %v372
    %609 = vrot.lane.b32.xlu0 %v606, 64
    %v610 = vpop.permute.xlu0 %609
    %v612 = vmul.f32 %v603, %v610
    %614 = vrot.lane.b32.xlu0 %v612, 64
    %v615 = vpop.permute.xlu0 %614
    %v617 = vadd.f32 %v607, %v615
    %v618 = vtanh.pop %v617
    %620 = vrot.lane.b32.xlu0 %v618, 64
    %v621 = vpop.permute.xlu0 %620
    %v623 = vmul.f32 %v605, %v621
    %625 = vrot.lane.b32.xlu0 %v512, 64
    %v626 = vpop.permute.xlu0 %625
    %v628 = vsel %vm272, %v623, %v626
    %629 = vmatprep.subr.mxu0 %v411
    %630 = vmatpush1.msra.mxu0 %v410
    %631 = vmatprep.subr.mxu0 %v409
    %632 = vmatpush1.msra.mxu0 %v408
    %633 = vmatprep.subr.mxu0 %v407
    %634 = vmatpush1.msra.mxu0 %v406
    %635 = vmatprep.subr.mxu0 %v405
    %636 = vmatpush1.msra.mxu0 %v404
    %637 = vmatprep.subr.mxu0 %v403
    %638 = vmatpush1.msra.mxu0 %v402
    %639 = vmatprep.subr.mxu0 %v401
    %640 = vmatpush1.msra.mxu0 %v400
    %641 = vmatprep.subr.mxu0 %v399
    %642 = vmatpush1.msra.mxu0 %v398
    %643 = vmatprep.subr.mxu0 %v397
    %644 = vmatpush1.msra.mxu0 %v396
    %645 = vmatprep.subr.mxu0 %v395
    %646 = vmatpush1.msra.mxu0 %v394
    %647 = vmatprep.subr.mxu0 %v393
    %648 = vmatpush1.msra.mxu0 %v392
    %649 = vmatprep.subr.mxu0 %v391
    %650 = vmatpush1.msra.mxu0 %v390
    %651 = vmatprep.subr.mxu0 %v389
    %652 = vmatpush1.msra.mxu0 %v388
    %653 = vmatprep.subr.mxu0 %v387
    %654 = vmatpush1.msra.mxu0 %v386
    %655 = vmatprep.subr.mxu0 %v385
    %656 = vmatpush1.msra.mxu0 %v384
    %657 = vmatprep.subr.mxu0 %v383
    %658 = vmatpush1.msra.mxu0 %v382
    %659 = vmatprep.subr.mxu0 %v381
    %660 = vmatpush1.msra.mxu0 %v380
    %661 = vmatprep.subr.mxu0 0.0
    %662 = vmatpush2.msra.mxu0 0.0
    %663 = vmatprep.subr.mxu0 0.0
    %664 = vmatpush2.msra.mxu0 0.0
    %665 = vmatprep.subr.mxu0 0.0
    %666 = vmatpush2.msra.mxu0 0.0
    %667 = vmatprep.subr.mxu0 0.0
    %668 = vmatpush2.msra.mxu0 0.0
    %669 = vmatprep.subr.mxu0 0.0
    %670 = vmatpush2.msra.mxu0 0.0
    %671 = vmatprep.subr.mxu0 0.0
    %672 = vmatpush2.msra.mxu0 0.0
    %673 = vmatprep.subr.mxu0 0.0
    %674 = vmatpush2.msra.mxu0 0.0
    %675 = vmatprep.subr.mxu0 0.0
    %676 = vmatpush2.msra.mxu0 0.0
    %677 = vmatprep.subr.mxu0 0.0
    %678 = vmatpush2.msra.mxu0 0.0
    %679 = vmatprep.subr.mxu0 0.0
    %680 = vmatpush2.msra.mxu0 0.0
    %681 = vmatprep.subr.mxu0 0.0
    %682 = vmatpush2.msra.mxu0 0.0
    %683 = vmatprep.subr.mxu0 0.0
    %684 = vmatpush2.msra.mxu0 0.0
    %685 = vmatprep.subr.mxu0 0.0
    %686 = vmatpush2.msra.mxu0 0.0
    %687 = vmatprep.subr.mxu0 0.0
    %688 = vmatpush2.msra.mxu0 0.0
    %689 = vmatprep.subr.mxu0 0.0
    %690 = vmatpush2.msra.mxu0 0.0
    %691 = vmatprep.subr.mxu0 0.0
    %692 = vmatpush2.msra.mxu0 0.0
    %693 = vmatprep.mubr.f32.mxu0 0.0
    %694 = vmatmul.mubr.f32.gmra.mxu0 %v628
    %v695 = vpop.f32.mrf.mxu0
    %v696 = vadd.f32 %v244, %v695
    %v697 = vpop.f32.mrf.mxu0
    %v698 = vadd.f32 %v248, %v697
    %699 = vdwg.mxu0
    %v700 = vxor.u32 %v696, 2147483648
    %v701 = vxor.u32 %v698, 2147483648
    %v702 = vmul.f32 %v700, 1.442695
    %v703 = vpow.pop %v702
    %v704 = vmul.f32 %v701, 1.442695
    %v705 = vpow.pop %v704
    %v706 = vadd.f32 %v703, 1.0
    %v707 = vadd.f32 %v705, 1.0
    %v708 = vrcp.pop %v706
    %v709 = vmul.f32 1.0, %v708
    %v710 = vrcp.pop %v707
    %v711 = vmul.f32 1.0, %v710
    %v712 = vtanh.pop %v698
    %v713 = vmul.f32 %v709, %v506
    %715 = vrot.lane.b32.xlu0 %v712, 64
    %v716 = vpop.permute.xlu0 %715
    %v718 = vmul.f32 %v709, %v716
    %720 = vrot.lane.b32.xlu0 %v718, 64
    %v721 = vpop.permute.xlu0 %720
    %v723 = vadd.f32 %v713, %v721
    %v724 = vtanh.pop %v723
    %726 = vrot.lane.b32.xlu0 %v724, 64
    %v727 = vpop.permute.xlu0 %726
    %v729 = vmul.f32 %v711, %v727
    %s730 = smul.u32 2, 2
    %s731 = smul.addr %s730, 8
    %s732 = scalar_lea.vmem [#allocation2], %s731
    %v733 = vld [vmem:[%s732] sm:$0xff]
    %v734 = vld [vmem:[%s732 + $0x8] sm:$0xff]
    %v736 = vsel %vm272, %v623, 0
    %738 = vmatprep.subr.mxu0 0.0
    %739 = vmatpush1.msra.mxu0 0.0
    %740 = vmatprep.subr.mxu0 0.0
    %741 = vmatpush1.msra.mxu0 0.0
    %742 = vmatprep.subr.mxu0 0.0
    %743 = vmatpush1.msra.mxu0 0.0
    %744 = vmatprep.subr.mxu0 0.0
    %745 = vmatpush1.msra.mxu0 0.0
    %746 = vmatprep.subr.mxu0 0.0
    %747 = vmatpush1.msra.mxu0 0.0
    %748 = vmatprep.subr.mxu0 0.0
    %749 = vmatpush1.msra.mxu0 0.0
    %750 = vmatprep.subr.mxu0 0.0
    %751 = vmatpush1.msra.mxu0 0.0
    %752 = vmatprep.subr.mxu0 0.0
    %753 = vmatpush1.msra.mxu0 0.0
    %754 = vmatprep.subr.mxu0 %v271
    %755 = vmatpush1.msra.mxu0 %v270
    %756 = vmatprep.subr.mxu0 %v269
    %757 = vmatpush1.msra.mxu0 %v268
    %758 = vmatprep.subr.mxu0 %v267
    %759 = vmatpush1.msra.mxu0 %v266
    %760 = vmatprep.subr.mxu0 %v265
    %761 = vmatpush1.msra.mxu0 %v264
    %762 = vmatprep.subr.mxu0 %v263
    %763 = vmatpush1.msra.mxu0 %v262
    %764 = vmatprep.subr.mxu0 %v261
    %765 = vmatpush1.msra.mxu0 %v260
    %766 = vmatprep.subr.mxu0 %v259
    %767 = vmatpush1.msra.mxu0 %v258
    %768 = vmatprep.subr.mxu0 %v257
    %769 = vmatpush1.msra.mxu0 %v256
    %770 = vmatprep.subr.mxu0 0.0
    %771 = vmatpush2.msra.mxu0 0.0
    %772 = vmatprep.subr.mxu0 0.0
    %773 = vmatpush2.msra.mxu0 0.0
    %774 = vmatprep.subr.mxu0 0.0
    %775 = vmatpush2.msra.mxu0 0.0
    %776 = vmatprep.subr.mxu0 0.0
    %777 = vmatpush2.msra.mxu0 0.0
    %778 = vmatprep.subr.mxu0 0.0
    %779 = vmatpush2.msra.mxu0 0.0
    %780 = vmatprep.subr.mxu0 0.0
    %781 = vmatpush2.msra.mxu0 0.0
    %782 = vmatprep.subr.mxu0 0.0
    %783 = vmatpush2.msra.mxu0 0.0
    %784 = vmatprep.subr.mxu0 0.0
    %785 = vmatpush2.msra.mxu0 0.0
    %786 = vmatprep.subr.mxu0 0.0
    %787 = vmatpush2.msra.mxu0 0.0
    %788 = vmatprep.subr.mxu0 0.0
    %789 = vmatpush2.msra.mxu0 0.0
    %790 = vmatprep.subr.mxu0 0.0
    %791 = vmatpush2.msra.mxu0 0.0
    %792 = vmatprep.subr.mxu0 0.0
    %793 = vmatpush2.msra.mxu0 0.0
    %794 = vmatprep.subr.mxu0 0.0
    %795 = vmatpush2.msra.mxu0 0.0
    %796 = vmatprep.subr.mxu0 0.0
    %797 = vmatpush2.msra.mxu0 0.0
    %798 = vmatprep.subr.mxu0 0.0
    %799 = vmatpush2.msra.mxu0 0.0
    %800 = vmatprep.subr.mxu0 0.0
    %801 = vmatpush2.msra.mxu0 0.0
    %802 = vmatprep.mubr.f32.mxu0 0.0
    %803 = vmatmul.mubr.f32.gmra.mxu0 %v736
    %v804 = vpop.f32.mrf.mxu0
    %v805 = vadd.f32 0.0, %v804
    %v806 = vpop.f32.mrf.mxu0
    %v807 = vadd.f32 0.0, %v806
    %808 = vdwg.mxu0
    %v809 = vadd.f32 %v733, %v805
    %v810 = vadd.f32 %v734, %v807
    %v811 = vxor.u32 %v809, 2147483648
    %v812 = vxor.u32 %v810, 2147483648
    %v813 = vmul.f32 %v811, 1.442695
    %v814 = vpow.pop %v813
    %v815 = vmul.f32 %v812, 1.442695
    %v816 = vpow.pop %v815
    %v817 = vadd.f32 %v814, 1.0
    %v818 = vadd.f32 %v816, 1.0
    %v819 = vrcp.pop %v817
    %v820 = vmul.f32 1.0, %v819
    %v821 = vrcp.pop %v818
    %v822 = vmul.f32 1.0, %v821
    %v823 = vtanh.pop %v810
    %v824 = vmul.f32 %v820, %v617
    %826 = vrot.lane.b32.xlu0 %v823, 64
    %v827 = vpop.permute.xlu0 %826
    %v829 = vmul.f32 %v820, %v827
    %831 = vrot.lane.b32.xlu0 %v829, 64
    %v832 = vpop.permute.xlu0 %831
    %v834 = vadd.f32 %v824, %v832
    %v835 = vtanh.pop %v834
    %837 = vrot.lane.b32.xlu0 %v835, 64
    %v838 = vpop.permute.xlu0 %837
    %v840 = vmul.f32 %v822, %v838
    %842 = vrot.lane.b32.xlu0 %v729, 64
    %v843 = vpop.permute.xlu0 %842
    %v845 = vsel %vm272, %v840, %v843
    %846 = vmatprep.subr.mxu0 %v411
    %847 = vmatpush1.msra.mxu0 %v410
    %848 = vmatprep.subr.mxu0 %v409
    %849 = vmatpush1.msra.mxu0 %v408
    %850 = vmatprep.subr.mxu0 %v407
    %851 = vmatpush1.msra.mxu0 %v406
    %852 = vmatprep.subr.mxu0 %v405
    %853 = vmatpush1.msra.mxu0 %v404
    %854 = vmatprep.subr.mxu0 %v403
    %855 = vmatpush1.msra.mxu0 %v402
    %856 = vmatprep.subr.mxu0 %v401
    %857 = vmatpush1.msra.mxu0 %v400
    %858 = vmatprep.subr.mxu0 %v399
    %859 = vmatpush1.msra.mxu0 %v398
    %860 = vmatprep.subr.mxu0 %v397
    %861 = vmatpush1.msra.mxu0 %v396
    %862 = vmatprep.subr.mxu0 %v395
    %863 = vmatpush1.msra.mxu0 %v394
    %864 = vmatprep.subr.mxu0 %v393
    %865 = vmatpush1.msra.mxu0 %v392
    %866 = vmatprep.subr.mxu0 %v391
    %867 = vmatpush1.msra.mxu0 %v390
    %868 = vmatprep.subr.mxu0 %v389
    %869 = vmatpush1.msra.mxu0 %v388
    %870 = vmatprep.subr.mxu0 %v387
    %871 = vmatpush1.msra.mxu0 %v386
    %872 = vmatprep.subr.mxu0 %v385
    %873 = vmatpush1.msra.mxu0 %v384
    %874 = vmatprep.subr.mxu0 %v383
    %875 = vmatpush1.msra.mxu0 %v382
    %876 = vmatprep.subr.mxu0 %v381
    %877 = vmatpush1.msra.mxu0 %v380
    %878 = vmatprep.subr.mxu0 0.0
    %879 = vmatpush2.msra.mxu0 0.0
    %880 = vmatprep.subr.mxu0 0.0
    %881 = vmatpush2.msra.mxu0 0.0
    %882 = vmatprep.subr.mxu0 0.0
    %883 = vmatpush2.msra.mxu0 0.0
    %884 = vmatprep.subr.mxu0 0.0
    %885 = vmatpush2.msra.mxu0 0.0
    %886 = vmatprep.subr.mxu0 0.0
    %887 = vmatpush2.msra.mxu0 0.0
    %888 = vmatprep.subr.mxu0 0.0
    %889 = vmatpush2.msra.mxu0 0.0
    %890 = vmatprep.subr.mxu0 0.0
    %891 = vmatpush2.msra.mxu0 0.0
    %892 = vmatprep.subr.mxu0 0.0
    %893 = vmatpush2.msra.mxu0 0.0
    %894 = vmatprep.subr.mxu0 0.0
    %895 = vmatpush2.msra.mxu0 0.0
    %896 = vmatprep.subr.mxu0 0.0
    %897 = vmatpush2.msra.mxu0 0.0
    %898 = vmatprep.subr.mxu0 0.0
    %899 = vmatpush2.msra.mxu0 0.0
    %900 = vmatprep.subr.mxu0 0.0
    %901 = vmatpush2.msra.mxu0 0.0
    %902 = vmatprep.subr.mxu0 0.0
    %903 = vmatpush2.msra.mxu0 0.0
    %904 = vmatprep.subr.mxu0 0.0
    %905 = vmatpush2.msra.mxu0 0.0
    %906 = vmatprep.subr.mxu0 0.0
    %907 = vmatpush2.msra.mxu0 0.0
    %908 = vmatprep.subr.mxu0 0.0
    %909 = vmatpush2.msra.mxu0 0.0
    %910 = vmatprep.mubr.f32.mxu0 0.0
    %911 = vmatmul.mubr.f32.gmra.mxu0 %v845
    %v912 = vpop.f32.mrf.mxu0
    %v913 = vadd.f32 %v244, %v912
    %v914 = vpop.f32.mrf.mxu0
    %v915 = vadd.f32 %v248, %v914
    %916 = vdwg.mxu0
    %v917 = vxor.u32 %v913, 2147483648
    %v918 = vxor.u32 %v915, 2147483648
    %v919 = vmul.f32 %v917, 1.442695
    %v920 = vpow.pop %v919
    %v921 = vmul.f32 %v918, 1.442695
    %v922 = vpow.pop %v921
    %v923 = vadd.f32 %v920, 1.0
    %v924 = vadd.f32 %v922, 1.0
    %v925 = vrcp.pop %v923
    %v926 = vmul.f32 1.0, %v925
    %v927 = vrcp.pop %v924
    %v928 = vmul.f32 1.0, %v927
    %v929 = vtanh.pop %v915
    %v930 = vmul.f32 %v926, %v723
    %932 = vrot.lane.b32.xlu0 %v929, 64
    %v933 = vpop.permute.xlu0 %932
    %v935 = vmul.f32 %v926, %v933
    %937 = vrot.lane.b32.xlu0 %v935, 64
    %v938 = vpop.permute.xlu0 %937
    %v940 = vadd.f32 %v930, %v938
    %v941 = vtanh.pop %v940
    %943 = vrot.lane.b32.xlu0 %v941, 64
    %v944 = vpop.permute.xlu0 %943
    %v946 = vmul.f32 %v928, %v944
    %s947 = smul.u32 3, 2
    %s948 = smul.addr %s947, 8
    %s949 = scalar_lea.vmem [#allocation2], %s948
    %v950 = vld [vmem:[%s949] sm:$0xff]
    %v951 = vld [vmem:[%s949 + $0x8] sm:$0xff]
    %v953 = vsel %vm272, %v840, 0
    %955 = vmatprep.subr.mxu0 0.0
    %956 = vmatpush1.msra.mxu0 0.0
    %957 = vmatprep.subr.mxu0 0.0
    %958 = vmatpush1.msra.mxu0 0.0
    %959 = vmatprep.subr.mxu0 0.0
    %960 = vmatpush1.msra.mxu0 0.0
    %961 = vmatprep.subr.mxu0 0.0
    %962 = vmatpush1.msra.mxu0 0.0
    %963 = vmatprep.subr.mxu0 0.0
    %964 = vmatpush1.msra.mxu0 0.0
    %965 = vmatprep.subr.mxu0 0.0
    %966 = vmatpush1.msra.mxu0 0.0
    %967 = vmatprep.subr.mxu0 0.0
    %968 = vmatpush1.msra.mxu0 0.0
    %969 = vmatprep.subr.mxu0 0.0
    %970 = vmatpush1.msra.mxu0 0.0
    %971 = vmatprep.subr.mxu0 %v271
    %972 = vmatpush1.msra.mxu0 %v270
    %973 = vmatprep.subr.mxu0 %v269
    %974 = vmatpush1.msra.mxu0 %v268
    %975 = vmatprep.subr.mxu0 %v267
    %976 = vmatpush1.msra.mxu0 %v266
    %977 = vmatprep.subr.mxu0 %v265
    %978 = vmatpush1.msra.mxu0 %v264
    %979 = vmatprep.subr.mxu0 %v263
    %980 = vmatpush1.msra.mxu0 %v262
    %981 = vmatprep.subr.mxu0 %v261
    %982 = vmatpush1.msra.mxu0 %v260
    %983 = vmatprep.subr.mxu0 %v259
    %984 = vmatpush1.msra.mxu0 %v258
    %985 = vmatprep.subr.mxu0 %v257
    %986 = vmatpush1.msra.mxu0 %v256
    %987 = vmatprep.subr.mxu0 0.0
    %988 = vmatpush2.msra.mxu0 0.0
    %989 = vmatprep.subr.mxu0 0.0
    %990 = vmatpush2.msra.mxu0 0.0
    %991 = vmatprep.subr.mxu0 0.0
    %992 = vmatpush2.msra.mxu0 0.0
    %993 = vmatprep.subr.mxu0 0.0
    %994 = vmatpush2.msra.mxu0 0.0
    %995 = vmatprep.subr.mxu0 0.0
    %996 = vmatpush2.msra.mxu0 0.0
    %997 = vmatprep.subr.mxu0 0.0
    %998 = vmatpush2.msra.mxu0 0.0
    %999 = vmatprep.subr.mxu0 0.0
    %1000 = vmatpush2.msra.mxu0 0.0
    %1001 = vmatprep.subr.mxu0 0.0
    %1002 = vmatpush2.msra.mxu0 0.0
    %1003 = vmatprep.subr.mxu0 0.0
    %1004 = vmatpush2.msra.mxu0 0.0
    %1005 = vmatprep.subr.mxu0 0.0
    %1006 = vmatpush2.msra.mxu0 0.0
    %1007 = vmatprep.subr.mxu0 0.0
    %1008 = vmatpush2.msra.mxu0 0.0
    %1009 = vmatprep.subr.mxu0 0.0
    %1010 = vmatpush2.msra.mxu0 0.0
    %1011 = vmatprep.subr.mxu0 0.0
    %1012 = vmatpush2.msra.mxu0 0.0
    %1013 = vmatprep.subr.mxu0 0.0
    %1014 = vmatpush2.msra.mxu0 0.0
    %1015 = vmatprep.subr.mxu0 0.0
    %1016 = vmatpush2.msra.mxu0 0.0
    %1017 = vmatprep.subr.mxu0 0.0
    %1018 = vmatpush2.msra.mxu0 0.0
    %1019 = vmatprep.mubr.f32.mxu0 0.0
    %1020 = vmatmul.mubr.f32.gmra.mxu0 %v953
    %v1021 = vpop.f32.mrf.mxu0
    %v1022 = vadd.f32 0.0, %v1021
    %v1023 = vpop.f32.mrf.mxu0
    %v1024 = vadd.f32 0.0, %v1023
    %1025 = vdwg.mxu0
    %v1026 = vadd.f32 %v950, %v1022
    %v1027 = vadd.f32 %v951, %v1024
    %v1028 = vxor.u32 %v1026, 2147483648
    %v1029 = vxor.u32 %v1027, 2147483648
    %v1030 = vmul.f32 %v1028, 1.442695
    %v1031 = vpow.pop %v1030
    %v1032 = vmul.f32 %v1029, 1.442695
    %v1033 = vpow.pop %v1032
    %v1034 = vadd.f32 %v1031, 1.0
    %v1035 = vadd.f32 %v1033, 1.0
    %v1036 = vrcp.pop %v1034
    %v1037 = vmul.f32 1.0, %v1036
    %v1038 = vrcp.pop %v1035
    %v1039 = vmul.f32 1.0, %v1038
    %v1040 = vtanh.pop %v1027
    %v1041 = vmul.f32 %v1037, %v834
    %1043 = vrot.lane.b32.xlu0 %v1040, 64
    %v1044 = vpop.permute.xlu0 %1043
    %v1046 = vmul.f32 %v1037, %v1044
    %1048 = vrot.lane.b32.xlu0 %v1046, 64
    %v1049 = vpop.permute.xlu0 %1048
    %v1051 = vadd.f32 %v1041, %v1049
    %v1052 = vtanh.pop %v1051
    %1054 = vrot.lane.b32.xlu0 %v1052, 64
    %v1055 = vpop.permute.xlu0 %1054
    %v1057 = vmul.f32 %v1039, %v1055
    %1059 = vrot.lane.b32.xlu0 %v946, 64
    %v1060 = vpop.permute.xlu0 %1059
    %v1062 = vsel %vm272, %v1057, %v1060
    %1063 = vmatprep.subr.mxu0 %v411
    %1064 = vmatpush1.msra.mxu0 %v410
    %1065 = vmatprep.subr.mxu0 %v409
    %1066 = vmatpush1.msra.mxu0 %v408
    %1067 = vmatprep.subr.mxu0 %v407
    %1068 = vmatpush1.msra.mxu0 %v406
    %1069 = vmatprep.subr.mxu0 %v405
    %1070 = vmatpush1.msra.mxu0 %v404
    %1071 = vmatprep.subr.mxu0 %v403
    %1072 = vmatpush1.msra.mxu0 %v402
    %1073 = vmatprep.subr.mxu0 %v401
    %1074 = vmatpush1.msra.mxu0 %v400
    %1075 = vmatprep.subr.mxu0 %v399
    %1076 = vmatpush1.msra.mxu0 %v398
    %1077 = vmatprep.subr.mxu0 %v397
    %1078 = vmatpush1.msra.mxu0 %v396
    %1079 = vmatprep.subr.mxu0 %v395
    %1080 = vmatpush1.msra.mxu0 %v394
    %1081 = vmatprep.subr.mxu0 %v393
    %1082 = vmatpush1.msra.mxu0 %v392
    %1083 = vmatprep.subr.mxu0 %v391
    %1084 = vmatpush1.msra.mxu0 %v390
    %1085 = vmatprep.subr.mxu0 %v389
    %1086 = vmatpush1.msra.mxu0 %v388
    %1087 = vmatprep.subr.mxu0 %v387
    %1088 = vmatpush1.msra.mxu0 %v386
    %1089 = vmatprep.subr.mxu0 %v385
    %1090 = vmatpush1.msra.mxu0 %v384
    %1091 = vmatprep.subr.mxu0 %v383
    %1092 = vmatpush1.msra.mxu0 %v382
    %1093 = vmatprep.subr.mxu0 %v381
    %1094 = vmatpush1.msra.mxu0 %v380
    %1095 = vmatprep.subr.mxu0 0.0
    %1096 = vmatpush2.msra.mxu0 0.0
    %1097 = vmatprep.subr.mxu0 0.0
    %1098 = vmatpush2.msra.mxu0 0.0
    %1099 = vmatprep.subr.mxu0 0.0
    %1100 = vmatpush2.msra.mxu0 0.0
    %1101 = vmatprep.subr.mxu0 0.0
    %1102 = vmatpush2.msra.mxu0 0.0
    %1103 = vmatprep.subr.mxu0 0.0
    %1104 = vmatpush2.msra.mxu0 0.0
    %1105 = vmatprep.subr.mxu0 0.0
    %1106 = vmatpush2.msra.mxu0 0.0
    %1107 = vmatprep.subr.mxu0 0.0
    %1108 = vmatpush2.msra.mxu0 0.0
    %1109 = vmatprep.subr.mxu0 0.0
    %1110 = vmatpush2.msra.mxu0 0.0
    %1111 = vmatprep.subr.mxu0 0.0
    %1112 = vmatpush2.msra.mxu0 0.0
    %1113 = vmatprep.subr.mxu0 0.0
    %1114 = vmatpush2.msra.mxu0 0.0
    %1115 = vmatprep.subr.mxu0 0.0
    %1116 = vmatpush2.msra.mxu0 0.0
    %1117 = vmatprep.subr.mxu0 0.0
    %1118 = vmatpush2.msra.mxu0 0.0
    %1119 = vmatprep.subr.mxu0 0.0
    %1120 = vmatpush2.msra.mxu0 0.0
    %1121 = vmatprep.subr.mxu0 0.0
    %1122 = vmatpush2.msra.mxu0 0.0
    %1123 = vmatprep.subr.mxu0 0.0
    %1124 = vmatpush2.msra.mxu0 0.0
    %1125 = vmatprep.subr.mxu0 0.0
    %1126 = vmatpush2.msra.mxu0 0.0
    %1127 = vmatprep.mubr.f32.mxu0 0.0
    %1128 = vmatmul.mubr.f32.gmra.mxu0 %v1062
    %v1129 = vpop.f32.mrf.mxu0
    %v1130 = vadd.f32 %v244, %v1129
    %v1131 = vpop.f32.mrf.mxu0
    %v1132 = vadd.f32 %v248, %v1131
    %1133 = vdwg.mxu0
    %v1134 = vxor.u32 %v1130, 2147483648
    %v1135 = vxor.u32 %v1132, 2147483648
    %v1136 = vmul.f32 %v1134, 1.442695
    %v1137 = vpow.pop %v1136
    %v1138 = vmul.f32 %v1135, 1.442695
    %v1139 = vpow.pop %v1138
    %v1140 = vadd.f32 %v1137, 1.0
    %v1141 = vadd.f32 %v1139, 1.0
    %v1142 = vrcp.pop %v1140
    %v1143 = vmul.f32 1.0, %v1142
    %v1144 = vrcp.pop %v1141
    %v1145 = vmul.f32 1.0, %v1144
    %v1146 = vtanh.pop %v1132
    %v1147 = vmul.f32 %v1143, %v940
    %1149 = vrot.lane.b32.xlu0 %v1146, 64
    %v1150 = vpop.permute.xlu0 %1149
    %v1152 = vmul.f32 %v1143, %v1150
    %1154 = vrot.lane.b32.xlu0 %v1152, 64
    %v1155 = vpop.permute.xlu0 %1154
    %v1157 = vadd.f32 %v1147, %v1155
    %v1158 = vtanh.pop %v1157
    %1160 = vrot.lane.b32.xlu0 %v1158, 64
    %v1161 = vpop.permute.xlu0 %1160
    %v1163 = vmul.f32 %v1145, %v1161
    %s1164 = smul.u32 4, 2
    %s1165 = smul.addr %s1164, 8
    %s1166 = scalar_lea.vmem [#allocation2], %s1165
    %v1167 = vld [vmem:[%s1166] sm:$0xff]
    %v1168 = vld [vmem:[%s1166 + $0x8] sm:$0xff]
    %v1170 = vsel %vm272, %v1057, 0
    %1172 = vmatprep.subr.mxu0 0.0
    %1173 = vmatpush1.msra.mxu0 0.0
    %1174 = vmatprep.subr.mxu0 0.0
    %1175 = vmatpush1.msra.mxu0 0.0
    %1176 = vmatprep.subr.mxu0 0.0
    %1177 = vmatpush1.msra.mxu0 0.0
    %1178 = vmatprep.subr.mxu0 0.0
    %1179 = vmatpush1.msra.mxu0 0.0
    %1180 = vmatprep.subr.mxu0 0.0
    %1181 = vmatpush1.msra.mxu0 0.0
    %1182 = vmatprep.subr.mxu0 0.0
    %1183 = vmatpush1.msra.mxu0 0.0
    %1184 = vmatprep.subr.mxu0 0.0
    %1185 = vmatpush1.msra.mxu0 0.0
    %1186 = vmatprep.subr.mxu0 0.0
    %1187 = vmatpush1.msra.mxu0 0.0
    %1188 = vmatprep.subr.mxu0 %v271
    %1189 = vmatpush1.msra.mxu0 %v270
    %1190 = vmatprep.subr.mxu0 %v269
    %1191 = vmatpush1.msra.mxu0 %v268
    %1192 = vmatprep.subr.mxu0 %v267
    %1193 = vmatpush1.msra.mxu0 %v266
    %1194 = vmatprep.subr.mxu0 %v265
    %1195 = vmatpush1.msra.mxu0 %v264
    %1196 = vmatprep.subr.mxu0 %v263
    %1197 = vmatpush1.msra.mxu0 %v262
    %1198 = vmatprep.subr.mxu0 %v261
    %1199 = vmatpush1.msra.mxu0 %v260
    %1200 = vmatprep.subr.mxu0 %v259
    %1201 = vmatpush1.msra.mxu0 %v258
    %1202 = vmatprep.subr.mxu0 %v257
    %1203 = vmatpush1.msra.mxu0 %v256
    %1204 = vmatprep.subr.mxu0 0.0
    %1205 = vmatpush2.msra.mxu0 0.0
    %1206 = vmatprep.subr.mxu0 0.0
    %1207 = vmatpush2.msra.mxu0 0.0
    %1208 = vmatprep.subr.mxu0 0.0
    %1209 = vmatpush2.msra.mxu0 0.0
    %1210 = vmatprep.subr.mxu0 0.0
    %1211 = vmatpush2.msra.mxu0 0.0
    %1212 = vmatprep.subr.mxu0 0.0
    %1213 = vmatpush2.msra.mxu0 0.0
    %1214 = vmatprep.subr.mxu0 0.0
    %1215 = vmatpush2.msra.mxu0 0.0
    %1216 = vmatprep.subr.mxu0 0.0
    %1217 = vmatpush2.msra.mxu0 0.0
    %1218 = vmatprep.subr.mxu0 0.0
    %1219 = vmatpush2.msra.mxu0 0.0
    %1220 = vmatprep.subr.mxu0 0.0
    %1221 = vmatpush2.msra.mxu0 0.0
    %1222 = vmatprep.subr.mxu0 0.0
    %1223 = vmatpush2.msra.mxu0 0.0
    %1224 = vmatprep.subr.mxu0 0.0
    %1225 = vmatpush2.msra.mxu0 0.0
    %1226 = vmatprep.subr.mxu0 0.0
    %1227 = vmatpush2.msra.mxu0 0.0
    %1228 = vmatprep.subr.mxu0 0.0
    %1229 = vmatpush2.msra.mxu0 0.0
    %1230 = vmatprep.subr.mxu0 0.0
    %1231 = vmatpush2.msra.mxu0 0.0
    %1232 = vmatprep.subr.mxu0 0.0
    %1233 = vmatpush2.msra.mxu0 0.0
    %1234 = vmatprep.subr.mxu0 0.0
    %1235 = vmatpush2.msra.mxu0 0.0
    %1236 = vmatprep.mubr.f32.mxu0 0.0
    %1237 = vmatmul.mubr.f32.gmra.mxu0 %v1170
    %v1238 = vpop.f32.mrf.mxu0
    %v1239 = vadd.f32 0.0, %v1238
    %v1240 = vpop.f32.mrf.mxu0
    %v1241 = vadd.f32 0.0, %v1240
    %1242 = vdwg.mxu0
    %v1243 = vadd.f32 %v1167, %v1239
    %v1244 = vadd.f32 %v1168, %v1241
    %v1245 = vxor.u32 %v1243, 2147483648
    %v1246 = vxor.u32 %v1244, 2147483648
    %v1247 = vmul.f32 %v1245, 1.442695
    %v1248 = vpow.pop %v1247
    %v1249 = vmul.f32 %v1246, 1.442695
    %v1250 = vpow.pop %v1249
    %v1251 = vadd.f32 %v1248, 1.0
    %v1252 = vadd.f32 %v1250, 1.0
    %v1253 = vrcp.pop %v1251
    %v1254 = vmul.f32 1.0, %v1253
    %v1255 = vrcp.pop %v1252
    %v1256 = vmul.f32 1.0, %v1255
    %v1257 = vtanh.pop %v1244
    %v1258 = vmul.f32 %v1254, %v1051
    %1260 = vrot.lane.b32.xlu0 %v1257, 64
    %v1261 = vpop.permute.xlu0 %1260
    %v1263 = vmul.f32 %v1254, %v1261
    %1265 = vrot.lane.b32.xlu0 %v1263, 64
    %v1266 = vpop.permute.xlu0 %1265
    %v1268 = vadd.f32 %v1258, %v1266
    %v1269 = vtanh.pop %v1268
    %1271 = vrot.lane.b32.xlu0 %v1269, 64
    %v1272 = vpop.permute.xlu0 %1271
    %v1274 = vmul.f32 %v1256, %v1272
    %1276 = vrot.lane.b32.xlu0 %v1163, 64
    %v1277 = vpop.permute.xlu0 %1276
    %v1279 = vsel %vm272, %v1274, %v1277
    %1280 = vmatprep.subr.mxu0 %v411
    %1281 = vmatpush1.msra.mxu0 %v410
    %1282 = vmatprep.subr.mxu0 %v409
    %1283 = vmatpush1.msra.mxu0 %v408
    %1284 = vmatprep.subr.mxu0 %v407
    %1285 = vmatpush1.msra.mxu0 %v406
    %1286 = vmatprep.subr.mxu0 %v405
    %1287 = vmatpush1.msra.mxu0 %v404
    %1288 = vmatprep.subr.mxu0 %v403
    %1289 = vmatpush1.msra.mxu0 %v402
    %1290 = vmatprep.subr.mxu0 %v401
    %1291 = vmatpush1.msra.mxu0 %v400
    %1292 = vmatprep.subr.mxu0 %v399
    %1293 = vmatpush1.msra.mxu0 %v398
    %1294 = vmatprep.subr.mxu0 %v397
    %1295 = vmatpush1.msra.mxu0 %v396
    %1296 = vmatprep.subr.mxu0 %v395
    %1297 = vmatpush1.msra.mxu0 %v394
    %1298 = vmatprep.subr.mxu0 %v393
    %1299 = vmatpush1.msra.mxu0 %v392
    %1300 = vmatprep.subr.mxu0 %v391
    %1301 = vmatpush1.msra.mxu0 %v390
    %1302 = vmatprep.subr.mxu0 %v389
    %1303 = vmatpush1.msra.mxu0 %v388
    %1304 = vmatprep.subr.mxu0 %v387
    %1305 = vmatpush1.msra.mxu0 %v386
    %1306 = vmatprep.subr.mxu0 %v385
    %1307 = vmatpush1.msra.mxu0 %v384
    %1308 = vmatprep.subr.mxu0 %v383
    %1309 = vmatpush1.msra.mxu0 %v382
    %1310 = vmatprep.subr.mxu0 %v381
    %1311 = vmatpush1.msra.mxu0 %v380
    %1312 = vmatprep.subr.mxu0 0.0
    %1313 = vmatpush2.msra.mxu0 0.0
    %1314 = vmatprep.subr.mxu0 0.0
    %1315 = vmatpush2.msra.mxu0 0.0
    %1316 = vmatprep.subr.mxu0 0.0
    %1317 = vmatpush2.msra.mxu0 0.0
    %1318 = vmatprep.subr.mxu0 0.0
    %1319 = vmatpush2.msra.mxu0 0.0
    %1320 = vmatprep.subr.mxu0 0.0
    %1321 = vmatpush2.msra.mxu0 0.0
    %1322 = vmatprep.subr.mxu0 0.0
    %1323 = vmatpush2.msra.mxu0 0.0
    %1324 = vmatprep.subr.mxu0 0.0
    %1325 = vmatpush2.msra.mxu0 0.0
    %1326 = vmatprep.subr.mxu0 0.0
    %1327 = vmatpush2.msra.mxu0 0.0
    %1328 = vmatprep.subr.mxu0 0.0
    %1329 = vmatpush2.msra.mxu0 0.0
    %1330 = vmatprep.subr.mxu0 0.0
    %1331 = vmatpush2.msra.mxu0 0.0
    %1332 = vmatprep.subr.mxu0 0.0
    %1333 = vmatpush2.msra.mxu0 0.0
    %1334 = vmatprep.subr.mxu0 0.0
    %1335 = vmatpush2.msra.mxu0 0.0
    %1336 = vmatprep.subr.mxu0 0.0
    %1337 = vmatpush2.msra.mxu0 0.0
    %1338 = vmatprep.subr.mxu0 0.0
    %1339 = vmatpush2.msra.mxu0 0.0
    %1340 = vmatprep.subr.mxu0 0.0
    %1341 = vmatpush2.msra.mxu0 0.0
    %1342 = vmatprep.subr.mxu0 0.0
    %1343 = vmatpush2.msra.mxu0 0.0
    %1344 = vmatprep.mubr.f32.mxu0 0.0
    %1345 = vmatmul.mubr.f32.gmra.mxu0 %v1279
    %v1346 = vpop.f32.mrf.mxu0
    %v1347 = vadd.f32 %v244, %v1346
    %v1348 = vpop.f32.mrf.mxu0
    %v1349 = vadd.f32 %v248, %v1348
    %1350 = vdwg.mxu0
    %v1351 = vxor.u32 %v1347, 2147483648
    %v1352 = vxor.u32 %v1349, 2147483648
    %v1353 = vmul.f32 %v1351, 1.442695
    %v1354 = vpow.pop %v1353
    %v1355 = vmul.f32 %v1352, 1.442695
    %v1356 = vpow.pop %v1355
    %v1357 = vadd.f32 %v1354, 1.0
    %v1358 = vadd.f32 %v1356, 1.0
    %v1359 = vrcp.pop %v1357
    %v1360 = vmul.f32 1.0, %v1359
    %v1361 = vrcp.pop %v1358
    %v1362 = vmul.f32 1.0, %v1361
    %v1363 = vtanh.pop %v1349
    %v1364 = vmul.f32 %v1360, %v1157
    %1366 = vrot.lane.b32.xlu0 %v1363, 64
    %v1367 = vpop.permute.xlu0 %1366
    %v1369 = vmul.f32 %v1360, %v1367
    %1371 = vrot.lane.b32.xlu0 %v1369, 64
    %v1372 = vpop.permute.xlu0 %1371
    %v1374 = vadd.f32 %v1364, %v1372
    %v1375 = vtanh.pop %v1374
    %1377 = vrot.lane.b32.xlu0 %v1375, 64
    %v1378 = vpop.permute.xlu0 %1377
    %v1380 = vmul.f32 %v1362, %v1378
    %s1381 = smul.u32 5, 2
    %s1382 = smul.addr %s1381, 8
    %s1383 = scalar_lea.vmem [#allocation2], %s1382
    %v1384 = vld [vmem:[%s1383] sm:$0xff]
    %v1385 = vld [vmem:[%s1383 + $0x8] sm:$0xff]
    %v1387 = vsel %vm272, %v1274, 0
    %1389 = vmatprep.subr.mxu0 0.0
    %1390 = vmatpush1.msra.mxu0 0.0
    %1391 = vmatprep.subr.mxu0 0.0
    %1392 = vmatpush1.msra.mxu0 0.0
    %1393 = vmatprep.subr.mxu0 0.0
    %1394 = vmatpush1.msra.mxu0 0.0
    %1395 = vmatprep.subr.mxu0 0.0
    %1396 = vmatpush1.msra.mxu0 0.0
    %1397 = vmatprep.subr.mxu0 0.0
    %1398 = vmatpush1.msra.mxu0 0.0
    %1399 = vmatprep.subr.mxu0 0.0
    %1400 = vmatpush1.msra.mxu0 0.0
    %1401 = vmatprep.subr.mxu0 0.0
    %1402 = vmatpush1.msra.mxu0 0.0
    %1403 = vmatprep.subr.mxu0 0.0
    %1404 = vmatpush1.msra.mxu0 0.0
    %1405 = vmatprep.subr.mxu0 %v271
    %1406 = vmatpush1.msra.mxu0 %v270
    %1407 = vmatprep.subr.mxu0 %v269
    %1408 = vmatpush1.msra.mxu0 %v268
    %1409 = vmatprep.subr.mxu0 %v267
    %1410 = vmatpush1.msra.mxu0 %v266
    %1411 = vmatprep.subr.mxu0 %v265
    %1412 = vmatpush1.msra.mxu0 %v264
    %1413 = vmatprep.subr.mxu0 %v263
    %1414 = vmatpush1.msra.mxu0 %v262
    %1415 = vmatprep.subr.mxu0 %v261
    %1416 = vmatpush1.msra.mxu0 %v260
    %1417 = vmatprep.subr.mxu0 %v259
    %1418 = vmatpush1.msra.mxu0 %v258
    %1419 = vmatprep.subr.mxu0 %v257
    %1420 = vmatpush1.msra.mxu0 %v256
    %1421 = vmatprep.subr.mxu0 0.0
    %1422 = vmatpush2.msra.mxu0 0.0
    %1423 = vmatprep.subr.mxu0 0.0
    %1424 = vmatpush2.msra.mxu0 0.0
    %1425 = vmatprep.subr.mxu0 0.0
    %1426 = vmatpush2.msra.mxu0 0.0
    %1427 = vmatprep.subr.mxu0 0.0
    %1428 = vmatpush2.msra.mxu0 0.0
    %1429 = vmatprep.subr.mxu0 0.0
    %1430 = vmatpush2.msra.mxu0 0.0
    %1431 = vmatprep.subr.mxu0 0.0
    %1432 = vmatpush2.msra.mxu0 0.0
    %1433 = vmatprep.subr.mxu0 0.0
    %1434 = vmatpush2.msra.mxu0 0.0
    %1435 = vmatprep.subr.mxu0 0.0
    %1436 = vmatpush2.msra.mxu0 0.0
    %1437 = vmatprep.subr.mxu0 0.0
    %1438 = vmatpush2.msra.mxu0 0.0
    %1439 = vmatprep.subr.mxu0 0.0
    %1440 = vmatpush2.msra.mxu0 0.0
    %1441 = vmatprep.subr.mxu0 0.0
    %1442 = vmatpush2.msra.mxu0 0.0
    %1443 = vmatprep.subr.mxu0 0.0
    %1444 = vmatpush2.msra.mxu0 0.0
    %1445 = vmatprep.subr.mxu0 0.0
    %1446 = vmatpush2.msra.mxu0 0.0
    %1447 = vmatprep.subr.mxu0 0.0
    %1448 = vmatpush2.msra.mxu0 0.0
    %1449 = vmatprep.subr.mxu0 0.0
    %1450 = vmatpush2.msra.mxu0 0.0
    %1451 = vmatprep.subr.mxu0 0.0
    %1452 = vmatpush2.msra.mxu0 0.0
    %1453 = vmatprep.mubr.f32.mxu0 0.0
    %1454 = vmatmul.mubr.f32.gmra.mxu0 %v1387
    %v1455 = vpop.f32.mrf.mxu0
    %v1456 = vadd.f32 0.0, %v1455
    %v1457 = vpop.f32.mrf.mxu0
    %v1458 = vadd.f32 0.0, %v1457
    %1459 = vdwg.mxu0
    %v1460 = vadd.f32 %v1384, %v1456
    %v1461 = vadd.f32 %v1385, %v1458
    %v1462 = vxor.u32 %v1460, 2147483648
    %v1463 = vxor.u32 %v1461, 2147483648
    %v1464 = vmul.f32 %v1462, 1.442695
    %v1465 = vpow.pop %v1464
    %v1466 = vmul.f32 %v1463, 1.442695
    %v1467 = vpow.pop %v1466
    %v1468 = vadd.f32 %v1465, 1.0
    %v1469 = vadd.f32 %v1467, 1.0
    %v1470 = vrcp.pop %v1468
    %v1471 = vmul.f32 1.0, %v1470
    %v1472 = vrcp.pop %v1469
    %v1473 = vmul.f32 1.0, %v1472
    %v1474 = vtanh.pop %v1461
    %v1475 = vmul.f32 %v1471, %v1268
    %1477 = vrot.lane.b32.xlu0 %v1474, 64
    %v1478 = vpop.permute.xlu0 %1477
    %v1480 = vmul.f32 %v1471, %v1478
    %1482 = vrot.lane.b32.xlu0 %v1480, 64
    %v1483 = vpop.permute.xlu0 %1482
    %v1485 = vadd.f32 %v1475, %v1483
    %v1486 = vtanh.pop %v1485
    %1488 = vrot.lane.b32.xlu0 %v1486, 64
    %v1489 = vpop.permute.xlu0 %1488
    %v1491 = vmul.f32 %v1473, %v1489
    %1493 = vrot.lane.b32.xlu0 %v1380, 64
    %v1494 = vpop.permute.xlu0 %1493
    %v1496 = vsel %vm272, %v1491, %v1494
    %1497 = vmatprep.subr.mxu0 %v411
    %1498 = vmatpush1.msra.mxu0 %v410
    %1499 = vmatprep.subr.mxu0 %v409
    %1500 = vmatpush1.msra.mxu0 %v408
    %1501 = vmatprep.subr.mxu0 %v407
    %1502 = vmatpush1.msra.mxu0 %v406
    %1503 = vmatprep.subr.mxu0 %v405
    %1504 = vmatpush1.msra.mxu0 %v404
    %1505 = vmatprep.subr.mxu0 %v403
    %1506 = vmatpush1.msra.mxu0 %v402
    %1507 = vmatprep.subr.mxu0 %v401
    %1508 = vmatpush1.msra.mxu0 %v400
    %1509 = vmatprep.subr.mxu0 %v399
    %1510 = vmatpush1.msra.mxu0 %v398
    %1511 = vmatprep.subr.mxu0 %v397
    %1512 = vmatpush1.msra.mxu0 %v396
    %1513 = vmatprep.subr.mxu0 %v395
    %1514 = vmatpush1.msra.mxu0 %v394
    %1515 = vmatprep.subr.mxu0 %v393
    %1516 = vmatpush1.msra.mxu0 %v392
    %1517 = vmatprep.subr.mxu0 %v391
    %1518 = vmatpush1.msra.mxu0 %v390
    %1519 = vmatprep.subr.mxu0 %v389
    %1520 = vmatpush1.msra.mxu0 %v388
    %1521 = vmatprep.subr.mxu0 %v387
    %1522 = vmatpush1.msra.mxu0 %v386
    %1523 = vmatprep.subr.mxu0 %v385
    %1524 = vmatpush1.msra.mxu0 %v384
    %1525 = vmatprep.subr.mxu0 %v383
    %1526 = vmatpush1.msra.mxu0 %v382
    %1527 = vmatprep.subr.mxu0 %v381
    %1528 = vmatpush1.msra.mxu0 %v380
    %1529 = vmatprep.subr.mxu0 0.0
    %1530 = vmatpush2.msra.mxu0 0.0
    %1531 = vmatprep.subr.mxu0 0.0
    %1532 = vmatpush2.msra.mxu0 0.0
    %1533 = vmatprep.subr.mxu0 0.0
    %1534 = vmatpush2.msra.mxu0 0.0
    %1535 = vmatprep.subr.mxu0 0.0
    %1536 = vmatpush2.msra.mxu0 0.0
    %1537 = vmatprep.subr.mxu0 0.0
    %1538 = vmatpush2.msra.mxu0 0.0
    %1539 = vmatprep.subr.mxu0 0.0
    %1540 = vmatpush2.msra.mxu0 0.0
    %1541 = vmatprep.subr.mxu0 0.0
    %1542 = vmatpush2.msra.mxu0 0.0
    %1543 = vmatprep.subr.mxu0 0.0
    %1544 = vmatpush2.msra.mxu0 0.0
    %1545 = vmatprep.subr.mxu0 0.0
    %1546 = vmatpush2.msra.mxu0 0.0
    %1547 = vmatprep.subr.mxu0 0.0
    %1548 = vmatpush2.msra.mxu0 0.0
    %1549 = vmatprep.subr.mxu0 0.0
    %1550 = vmatpush2.msra.mxu0 0.0
    %1551 = vmatprep.subr.mxu0 0.0
    %1552 = vmatpush2.msra.mxu0 0.0
    %1553 = vmatprep.subr.mxu0 0.0
    %1554 = vmatpush2.msra.mxu0 0.0
    %1555 = vmatprep.subr.mxu0 0.0
    %1556 = vmatpush2.msra.mxu0 0.0
    %1557 = vmatprep.subr.mxu0 0.0
    %1558 = vmatpush2.msra.mxu0 0.0
    %1559 = vmatprep.subr.mxu0 0.0
    %1560 = vmatpush2.msra.mxu0 0.0
    %1561 = vmatprep.mubr.f32.mxu0 0.0
    %1562 = vmatmul.mubr.f32.gmra.mxu0 %v1496
    %v1563 = vpop.f32.mrf.mxu0
    %v1564 = vadd.f32 %v244, %v1563
    %v1565 = vpop.f32.mrf.mxu0
    %v1566 = vadd.f32 %v248, %v1565
    %1567 = vdwg.mxu0
    %v1568 = vxor.u32 %v1564, 2147483648
    %v1569 = vxor.u32 %v1566, 2147483648
    %v1570 = vmul.f32 %v1568, 1.442695
    %v1571 = vpow.pop %v1570
    %v1572 = vmul.f32 %v1569, 1.442695
    %v1573 = vpow.pop %v1572
    %v1574 = vadd.f32 %v1571, 1.0
    %v1575 = vadd.f32 %v1573, 1.0
    %v1576 = vrcp.pop %v1574
    %v1577 = vmul.f32 1.0, %v1576
    %v1578 = vrcp.pop %v1575
    %v1579 = vmul.f32 1.0, %v1578
    %v1580 = vtanh.pop %v1566
    %v1581 = vmul.f32 %v1577, %v1374
    %1583 = vrot.lane.b32.xlu0 %v1580, 64
    %v1584 = vpop.permute.xlu0 %1583
    %v1586 = vmul.f32 %v1577, %v1584
    %1588 = vrot.lane.b32.xlu0 %v1586, 64
    %v1589 = vpop.permute.xlu0 %1588
    %v1591 = vadd.f32 %v1581, %v1589
    %v1592 = vtanh.pop %v1591
    %1594 = vrot.lane.b32.xlu0 %v1592, 64
    %v1595 = vpop.permute.xlu0 %1594
    %v1597 = vmul.f32 %v1579, %v1595
    %s1598 = smul.u32 6, 2
    %s1599 = smul.addr %s1598, 8
    %s1600 = scalar_lea.vmem [#allocation2], %s1599
    %v1601 = vld [vmem:[%s1600] sm:$0xff]
    %v1602 = vld [vmem:[%s1600 + $0x8] sm:$0xff]
    %v1604 = vsel %vm272, %v1491, 0
    %1606 = vmatprep.subr.mxu0 0.0
    %1607 = vmatpush1.msra.mxu0 0.0
    %1608 = vmatprep.subr.mxu0 0.0
    %1609 = vmatpush1.msra.mxu0 0.0
    %1610 = vmatprep.subr.mxu0 0.0
    %1611 = vmatpush1.msra.mxu0 0.0
    %1612 = vmatprep.subr.mxu0 0.0
    %1613 = vmatpush1.msra.mxu0 0.0
    %1614 = vmatprep.subr.mxu0 0.0
    %1615 = vmatpush1.msra.mxu0 0.0
    %1616 = vmatprep.subr.mxu0 0.0
    %1617 = vmatpush1.msra.mxu0 0.0
    %1618 = vmatprep.subr.mxu0 0.0
    %1619 = vmatpush1.msra.mxu0 0.0
    %1620 = vmatprep.subr.mxu0 0.0
    %1621 = vmatpush1.msra.mxu0 0.0
    %1622 = vmatprep.subr.mxu0 %v271
    %1623 = vmatpush1.msra.mxu0 %v270
    %1624 = vmatprep.subr.mxu0 %v269
    %1625 = vmatpush1.msra.mxu0 %v268
    %1626 = vmatprep.subr.mxu0 %v267
    %1627 = vmatpush1.msra.mxu0 %v266
    %1628 = vmatprep.subr.mxu0 %v265
    %1629 = vmatpush1.msra.mxu0 %v264
    %1630 = vmatprep.subr.mxu0 %v263
    %1631 = vmatpush1.msra.mxu0 %v262
    %1632 = vmatprep.subr.mxu0 %v261
    %1633 = vmatpush1.msra.mxu0 %v260
    %1634 = vmatprep.subr.mxu0 %v259
    %1635 = vmatpush1.msra.mxu0 %v258
    %1636 = vmatprep.subr.mxu0 %v257
    %1637 = vmatpush1.msra.mxu0 %v256
    %1638 = vmatprep.subr.mxu0 0.0
    %1639 = vmatpush2.msra.mxu0 0.0
    %1640 = vmatprep.subr.mxu0 0.0
    %1641 = vmatpush2.msra.mxu0 0.0
    %1642 = vmatprep.subr.mxu0 0.0
    %1643 = vmatpush2.msra.mxu0 0.0
    %1644 = vmatprep.subr.mxu0 0.0
    %1645 = vmatpush2.msra.mxu0 0.0
    %1646 = vmatprep.subr.mxu0 0.0
    %1647 = vmatpush2.msra.mxu0 0.0
    %1648 = vmatprep.subr.mxu0 0.0
    %1649 = vmatpush2.msra.mxu0 0.0
    %1650 = vmatprep.subr.mxu0 0.0
    %1651 = vmatpush2.msra.mxu0 0.0
    %1652 = vmatprep.subr.mxu0 0.0
    %1653 = vmatpush2.msra.mxu0 0.0
    %1654 = vmatprep.subr.mxu0 0.0
    %1655 = vmatpush2.msra.mxu0 0.0
    %1656 = vmatprep.subr.mxu0 0.0
    %1657 = vmatpush2.msra.mxu0 0.0
    %1658 = vmatprep.subr.mxu0 0.0
    %1659 = vmatpush2.msra.mxu0 0.0
    %1660 = vmatprep.subr.mxu0 0.0
    %1661 = vmatpush2.msra.mxu0 0.0
    %1662 = vmatprep.subr.mxu0 0.0
    %1663 = vmatpush2.msra.mxu0 0.0
    %1664 = vmatprep.subr.mxu0 0.0
    %1665 = vmatpush2.msra.mxu0 0.0
    %1666 = vmatprep.subr.mxu0 0.0
    %1667 = vmatpush2.msra.mxu0 0.0
    %1668 = vmatprep.subr.mxu0 0.0
    %1669 = vmatpush2.msra.mxu0 0.0
    %1670 = vmatprep.mubr.f32.mxu0 0.0
    %1671 = vmatmul.mubr.f32.gmra.mxu0 %v1604
    %v1672 = vpop.f32.mrf.mxu0
    %v1673 = vadd.f32 0.0, %v1672
    %v1674 = vpop.f32.mrf.mxu0
    %v1675 = vadd.f32 0.0, %v1674
    %1676 = vdwg.mxu0
    %v1677 = vadd.f32 %v1601, %v1673
    %v1678 = vadd.f32 %v1602, %v1675
    %v1679 = vxor.u32 %v1677, 2147483648
    %v1680 = vxor.u32 %v1678, 2147483648
    %v1681 = vmul.f32 %v1679, 1.442695
    %v1682 = vpow.pop %v1681
    %v1683 = vmul.f32 %v1680, 1.442695
    %v1684 = vpow.pop %v1683
    %v1685 = vadd.f32 %v1682, 1.0
    %v1686 = vadd.f32 %v1684, 1.0
    %v1687 = vrcp.pop %v1685
    %v1688 = vmul.f32 1.0, %v1687
    %v1689 = vrcp.pop %v1686
    %v1690 = vmul.f32 1.0, %v1689
    %v1691 = vtanh.pop %v1678
    %v1692 = vmul.f32 %v1688, %v1485
    %1694 = vrot.lane.b32.xlu0 %v1691, 64
    %v1695 = vpop.permute.xlu0 %1694
    %v1697 = vmul.f32 %v1688, %v1695
    %1699 = vrot.lane.b32.xlu0 %v1697, 64
    %v1700 = vpop.permute.xlu0 %1699
    %v1702 = vadd.f32 %v1692, %v1700
    %v1703 = vtanh.pop %v1702
    %1705 = vrot.lane.b32.xlu0 %v1703, 64
    %v1706 = vpop.permute.xlu0 %1705
    %v1708 = vmul.f32 %v1690, %v1706
    %1710 = vrot.lane.b32.xlu0 %v1597, 64
    %v1711 = vpop.permute.xlu0 %1710
    %v1713 = vsel %vm272, %v1708, %v1711
    %1714 = vmatprep.subr.mxu0 %v411
    %1715 = vmatpush1.msra.mxu0 %v410
    %1716 = vmatprep.subr.mxu0 %v409
    %1717 = vmatpush1.msra.mxu0 %v408
    %1718 = vmatprep.subr.mxu0 %v407
    %1719 = vmatpush1.msra.mxu0 %v406
    %1720 = vmatprep.subr.mxu0 %v405
    %1721 = vmatpush1.msra.mxu0 %v404
    %1722 = vmatprep.subr.mxu0 %v403
    %1723 = vmatpush1.msra.mxu0 %v402
    %1724 = vmatprep.subr.mxu0 %v401
    %1725 = vmatpush1.msra.mxu0 %v400
    %1726 = vmatprep.subr.mxu0 %v399
    %1727 = vmatpush1.msra.mxu0 %v398
    %1728 = vmatprep.subr.mxu0 %v397
    %1729 = vmatpush1.msra.mxu0 %v396
    %1730 = vmatprep.subr.mxu0 %v395
    %1731 = vmatpush1.msra.mxu0 %v394
    %1732 = vmatprep.subr.mxu0 %v393
    %1733 = vmatpush1.msra.mxu0 %v392
    %1734 = vmatprep.subr.mxu0 %v391
    %1735 = vmatpush1.msra.mxu0 %v390
    %1736 = vmatprep.subr.mxu0 %v389
    %1737 = vmatpush1.msra.mxu0 %v388
    %1738 = vmatprep.subr.mxu0 %v387
    %1739 = vmatpush1.msra.mxu0 %v386
    %1740 = vmatprep.subr.mxu0 %v385
    %1741 = vmatpush1.msra.mxu0 %v384
    %1742 = vmatprep.subr.mxu0 %v383
    %1743 = vmatpush1.msra.mxu0 %v382
    %1744 = vmatprep.subr.mxu0 %v381
    %1745 = vmatpush1.msra.mxu0 %v380
    %1746 = vmatprep.subr.mxu0 0.0
    %1747 = vmatpush2.msra.mxu0 0.0
    %1748 = vmatprep.subr.mxu0 0.0
    %1749 = vmatpush2.msra.mxu0 0.0
    %1750 = vmatprep.subr.mxu0 0.0
    %1751 = vmatpush2.msra.mxu0 0.0
    %1752 = vmatprep.subr.mxu0 0.0
    %1753 = vmatpush2.msra.mxu0 0.0
    %1754 = vmatprep.subr.mxu0 0.0
    %1755 = vmatpush2.msra.mxu0 0.0
    %1756 = vmatprep.subr.mxu0 0.0
    %1757 = vmatpush2.msra.mxu0 0.0
    %1758 = vmatprep.subr.mxu0 0.0
    %1759 = vmatpush2.msra.mxu0 0.0
    %1760 = vmatprep.subr.mxu0 0.0
    %1761 = vmatpush2.msra.mxu0 0.0
    %1762 = vmatprep.subr.mxu0 0.0
    %1763 = vmatpush2.msra.mxu0 0.0
    %1764 = vmatprep.subr.mxu0 0.0
    %1765 = vmatpush2.msra.mxu0 0.0
    %1766 = vmatprep.subr.mxu0 0.0
    %1767 = vmatpush2.msra.mxu0 0.0
    %1768 = vmatprep.subr.mxu0 0.0
    %1769 = vmatpush2.msra.mxu0 0.0
    %1770 = vmatprep.subr.mxu0 0.0
    %1771 = vmatpush2.msra.mxu0 0.0
    %1772 = vmatprep.subr.mxu0 0.0
    %1773 = vmatpush2.msra.mxu0 0.0
    %1774 = vmatprep.subr.mxu0 0.0
    %1775 = vmatpush2.msra.mxu0 0.0
    %1776 = vmatprep.subr.mxu0 0.0
    %1777 = vmatpush2.msra.mxu0 0.0
    %1778 = vmatprep.mubr.f32.mxu0 0.0
    %1779 = vmatmul.mubr.f32.gmra.mxu0 %v1713
    %v1780 = vpop.f32.mrf.mxu0
    %v1781 = vadd.f32 %v244, %v1780
    %v1782 = vpop.f32.mrf.mxu0
    %v1783 = vadd.f32 %v248, %v1782
    %1784 = vdwg.mxu0
    %v1785 = vxor.u32 %v1781, 2147483648
    %v1786 = vxor.u32 %v1783, 2147483648
    %v1787 = vmul.f32 %v1785, 1.442695
    %v1788 = vpow.pop %v1787
    %v1789 = vmul.f32 %v1786, 1.442695
    %v1790 = vpow.pop %v1789
    %v1791 = vadd.f32 %v1788, 1.0
    %v1792 = vadd.f32 %v1790, 1.0
    %v1793 = vrcp.pop %v1791
    %v1794 = vmul.f32 1.0, %v1793
    %v1795 = vrcp.pop %v1792
    %v1796 = vmul.f32 1.0, %v1795
    %v1797 = vtanh.pop %v1783
    %v1798 = vmul.f32 %v1794, %v1591
    %1800 = vrot.lane.b32.xlu0 %v1797, 64
    %v1801 = vpop.permute.xlu0 %1800
    %v1803 = vmul.f32 %v1794, %v1801
    %1805 = vrot.lane.b32.xlu0 %v1803, 64
    %v1806 = vpop.permute.xlu0 %1805
    %v1808 = vadd.f32 %v1798, %v1806
    %v1809 = vtanh.pop %v1808
    %1811 = vrot.lane.b32.xlu0 %v1809, 64
    %v1812 = vpop.permute.xlu0 %1811
    %v1814 = vmul.f32 %v1796, %v1812
    %s1815 = smul.u32 7, 2
    %s1816 = smul.addr %s1815, 8
    %s1817 = scalar_lea.vmem [#allocation2], %s1816
    %v1818 = vld [vmem:[%s1817] sm:$0xff]
    %v1819 = vld [vmem:[%s1817 + $0x8] sm:$0xff]
    %v1821 = vsel %vm272, %v1708, 0
    %1823 = vmatprep.subr.mxu0 0.0
    %1824 = vmatpush1.msra.mxu0 0.0
    %1825 = vmatprep.subr.mxu0 0.0
    %1826 = vmatpush1.msra.mxu0 0.0
    %1827 = vmatprep.subr.mxu0 0.0
    %1828 = vmatpush1.msra.mxu0 0.0
    %1829 = vmatprep.subr.mxu0 0.0
    %1830 = vmatpush1.msra.mxu0 0.0
    %1831 = vmatprep.subr.mxu0 0.0
    %1832 = vmatpush1.msra.mxu0 0.0
    %1833 = vmatprep.subr.mxu0 0.0
    %1834 = vmatpush1.msra.mxu0 0.0
    %1835 = vmatprep.subr.mxu0 0.0
    %1836 = vmatpush1.msra.mxu0 0.0
    %1837 = vmatprep.subr.mxu0 0.0
    %1838 = vmatpush1.msra.mxu0 0.0
    %1839 = vmatprep.subr.mxu0 %v271
    %1840 = vmatpush1.msra.mxu0 %v270
    %1841 = vmatprep.subr.mxu0 %v269
    %1842 = vmatpush1.msra.mxu0 %v268
    %1843 = vmatprep.subr.mxu0 %v267
    %1844 = vmatpush1.msra.mxu0 %v266
    %1845 = vmatprep.subr.mxu0 %v265
    %1846 = vmatpush1.msra.mxu0 %v264
    %1847 = vmatprep.subr.mxu0 %v263
    %1848 = vmatpush1.msra.mxu0 %v262
    %1849 = vmatprep.subr.mxu0 %v261
    %1850 = vmatpush1.msra.mxu0 %v260
    %1851 = vmatprep.subr.mxu0 %v259
    %1852 = vmatpush1.msra.mxu0 %v258
    %1853 = vmatprep.subr.mxu0 %v257
    %1854 = vmatpush1.msra.mxu0 %v256
    %1855 = vmatprep.subr.mxu0 0.0
    %1856 = vmatpush2.msra.mxu0 0.0
    %1857 = vmatprep.subr.mxu0 0.0
    %1858 = vmatpush2.msra.mxu0 0.0
    %1859 = vmatprep.subr.mxu0 0.0
    %1860 = vmatpush2.msra.mxu0 0.0
    %1861 = vmatprep.subr.mxu0 0.0
    %1862 = vmatpush2.msra.mxu0 0.0
    %1863 = vmatprep.subr.mxu0 0.0
    %1864 = vmatpush2.msra.mxu0 0.0
    %1865 = vmatprep.subr.mxu0 0.0
    %1866 = vmatpush2.msra.mxu0 0.0
    %1867 = vmatprep.subr.mxu0 0.0
    %1868 = vmatpush2.msra.mxu0 0.0
    %1869 = vmatprep.subr.mxu0 0.0
    %1870 = vmatpush2.msra.mxu0 0.0
    %1871 = vmatprep.subr.mxu0 0.0
    %1872 = vmatpush2.msra.mxu0 0.0
    %1873 = vmatprep.subr.mxu0 0.0
    %1874 = vmatpush2.msra.mxu0 0.0
    %1875 = vmatprep.subr.mxu0 0.0
    %1876 = vmatpush2.msra.mxu0 0.0
    %1877 = vmatprep.subr.mxu0 0.0
    %1878 = vmatpush2.msra.mxu0 0.0
    %1879 = vmatprep.subr.mxu0 0.0
    %1880 = vmatpush2.msra.mxu0 0.0
    %1881 = vmatprep.subr.mxu0 0.0
    %1882 = vmatpush2.msra.mxu0 0.0
    %1883 = vmatprep.subr.mxu0 0.0
    %1884 = vmatpush2.msra.mxu0 0.0
    %1885 = vmatprep.subr.mxu0 0.0
    %1886 = vmatpush2.msra.mxu0 0.0
    %1887 = vmatprep.mubr.f32.mxu0 0.0
    %1888 = vmatmul.mubr.f32.gmra.mxu0 %v1821
    %v1889 = vpop.f32.mrf.mxu0
    %v1890 = vadd.f32 0.0, %v1889
    %v1891 = vpop.f32.mrf.mxu0
    %v1892 = vadd.f32 0.0, %v1891
    %1893 = vdwg.mxu0
    %v1894 = vadd.f32 %v1818, %v1890
    %v1895 = vadd.f32 %v1819, %v1892
    %v1896 = vxor.u32 %v1894, 2147483648
    %v1897 = vxor.u32 %v1895, 2147483648
    %v1898 = vmul.f32 %v1896, 1.442695
    %v1899 = vpow.pop %v1898
    %v1900 = vmul.f32 %v1897, 1.442695
    %v1901 = vpow.pop %v1900
    %v1902 = vadd.f32 %v1899, 1.0
    %v1903 = vadd.f32 %v1901, 1.0
    %v1904 = vrcp.pop %v1902
    %v1905 = vmul.f32 1.0, %v1904
    %v1906 = vrcp.pop %v1903
    %v1907 = vmul.f32 1.0, %v1906
    %v1908 = vtanh.pop %v1895
    %v1909 = vmul.f32 %v1905, %v1702
    %1911 = vrot.lane.b32.xlu0 %v1908, 64
    %v1912 = vpop.permute.xlu0 %1911
    %v1914 = vmul.f32 %v1905, %v1912
    %1916 = vrot.lane.b32.xlu0 %v1914, 64
    %v1917 = vpop.permute.xlu0 %1916
    %v1919 = vadd.f32 %v1909, %v1917
    %v1920 = vtanh.pop %v1919
    %1922 = vrot.lane.b32.xlu0 %v1920, 64
    %v1923 = vpop.permute.xlu0 %1922
    %v1925 = vmul.f32 %v1907, %v1923
    %1927 = vrot.lane.b32.xlu0 %v1814, 64
    %v1928 = vpop.permute.xlu0 %1927
    %v1930 = vsel %vm272, %v1925, %v1928
    %1931 = vmatprep.subr.mxu0 %v411
    %1932 = vmatpush1.msra.mxu0 %v410
    %1933 = vmatprep.subr.mxu0 %v409
    %1934 = vmatpush1.msra.mxu0 %v408
    %1935 = vmatprep.subr.mxu0 %v407
    %1936 = vmatpush1.msra.mxu0 %v406
    %1937 = vmatprep.subr.mxu0 %v405
    %1938 = vmatpush1.msra.mxu0 %v404
    %1939 = vmatprep.subr.mxu0 %v403
    %1940 = vmatpush1.msra.mxu0 %v402
    %1941 = vmatprep.subr.mxu0 %v401
    %1942 = vmatpush1.msra.mxu0 %v400
    %1943 = vmatprep.subr.mxu0 %v399
    %1944 = vmatpush1.msra.mxu0 %v398
    %1945 = vmatprep.subr.mxu0 %v397
    %1946 = vmatpush1.msra.mxu0 %v396
    %1947 = vmatprep.subr.mxu0 %v395
    %1948 = vmatpush1.msra.mxu0 %v394
    %1949 = vmatprep.subr.mxu0 %v393
    %1950 = vmatpush1.msra.mxu0 %v392
    %1951 = vmatprep.subr.mxu0 %v391
    %1952 = vmatpush1.msra.mxu0 %v390
    %1953 = vmatprep.subr.mxu0 %v389
    %1954 = vmatpush1.msra.mxu0 %v388
    %1955 = vmatprep.subr.mxu0 %v387
    %1956 = vmatpush1.msra.mxu0 %v386
    %1957 = vmatprep.subr.mxu0 %v385
    %1958 = vmatpush1.msra.mxu0 %v384
    %1959 = vmatprep.subr.mxu0 %v383
    %1960 = vmatpush1.msra.mxu0 %v382
    %1961 = vmatprep.subr.mxu0 %v381
    %1962 = vmatpush1.msra.mxu0 %v380
    %1963 = vmatprep.subr.mxu0 0.0
    %1964 = vmatpush2.msra.mxu0 0.0
    %1965 = vmatprep.subr.mxu0 0.0
    %1966 = vmatpush2.msra.mxu0 0.0
    %1967 = vmatprep.subr.mxu0 0.0
    %1968 = vmatpush2.msra.mxu0 0.0
    %1969 = vmatprep.subr.mxu0 0.0
    %1970 = vmatpush2.msra.mxu0 0.0
    %1971 = vmatprep.subr.mxu0 0.0
    %1972 = vmatpush2.msra.mxu0 0.0
    %1973 = vmatprep.subr.mxu0 0.0
    %1974 = vmatpush2.msra.mxu0 0.0
    %1975 = vmatprep.subr.mxu0 0.0
    %1976 = vmatpush2.msra.mxu0 0.0
    %1977 = vmatprep.subr.mxu0 0.0
    %1978 = vmatpush2.msra.mxu0 0.0
    %1979 = vmatprep.subr.mxu0 0.0
    %1980 = vmatpush2.msra.mxu0 0.0
    %1981 = vmatprep.subr.mxu0 0.0
    %1982 = vmatpush2.msra.mxu0 0.0
    %1983 = vmatprep.subr.mxu0 0.0
    %1984 = vmatpush2.msra.mxu0 0.0
    %1985 = vmatprep.subr.mxu0 0.0
    %1986 = vmatpush2.msra.mxu0 0.0
    %1987 = vmatprep.subr.mxu0 0.0
    %1988 = vmatpush2.msra.mxu0 0.0
    %1989 = vmatprep.subr.mxu0 0.0
    %1990 = vmatpush2.msra.mxu0 0.0
    %1991 = vmatprep.subr.mxu0 0.0
    %1992 = vmatpush2.msra.mxu0 0.0
    %1993 = vmatprep.subr.mxu0 0.0
    %1994 = vmatpush2.msra.mxu0 0.0
    %1995 = vmatprep.mubr.f32.mxu0 0.0
    %1996 = vmatmul.mubr.f32.gmra.mxu0 %v1930
    %v1997 = vpop.f32.mrf.mxu0
    %v1998 = vadd.f32 %v244, %v1997
    %v1999 = vpop.f32.mrf.mxu0
    %v2000 = vadd.f32 %v248, %v1999
    %2001 = vdwg.mxu0
    %v2002 = vxor.u32 %v1998, 2147483648
    %v2003 = vxor.u32 %v2000, 2147483648
    %v2004 = vmul.f32 %v2002, 1.442695
    %v2005 = vpow.pop %v2004
    %v2006 = vmul.f32 %v2003, 1.442695
    %v2007 = vpow.pop %v2006
    %v2008 = vadd.f32 %v2005, 1.0
    %v2009 = vadd.f32 %v2007, 1.0
    %v2010 = vrcp.pop %v2008
    %v2011 = vmul.f32 1.0, %v2010
    %v2012 = vrcp.pop %v2009
    %v2013 = vmul.f32 1.0, %v2012
    %v2014 = vtanh.pop %v2000
    %v2015 = vmul.f32 %v2011, %v1808
    %2017 = vrot.lane.b32.xlu0 %v2014, 64
    %v2018 = vpop.permute.xlu0 %2017
    %v2020 = vmul.f32 %v2011, %v2018
    %2022 = vrot.lane.b32.xlu0 %v2020, 64
    %v2023 = vpop.permute.xlu0 %2022
    %v2025 = vadd.f32 %v2015, %v2023
    %v2026 = vtanh.pop %v2025
    %2028 = vrot.lane.b32.xlu0 %v2026, 64
    %v2029 = vpop.permute.xlu0 %2028
    %v2031 = vmul.f32 %v2013, %v2029
    %v2032 = vld [vmem:[%s6] sm:$0xff]
    %v2033 = vld [vmem:[%s6 + $0x8] sm:$0xff]
    %v2034 = vld [vmem:[%s6 + $0x10] sm:$0xff]
    %v2035 = vld [vmem:[%s6 + $0x18] sm:$0xff]
    %v2036 = vld [vmem:[%s6 + $0x20] sm:$0xff]
    %v2037 = vld [vmem:[%s6 + $0x28] sm:$0xff]
    %v2038 = vld [vmem:[%s6 + $0x30] sm:$0xff]
    %v2039 = vld [vmem:[%s6 + $0x38] sm:$0xff]
    %v2040 = vld [vmem:[%s7] sm:$0x1]
    %v2042 = vlaneseq
    %v2043 = vshrl.u32 %v2042, 7
    %v2044 = vsub.s32 0, %v2043
    %v2045 = vrot.slane %v2040, %v2044
    %v2048 = vsel %vm272, %v2031, 0
    %2050 = vmatprep.subr.mxu0 0.0
    %2051 = vmatpush1.msra.mxu0 0.0
    %2052 = vmatprep.subr.mxu0 0.0
    %2053 = vmatpush1.msra.mxu0 0.0
    %2054 = vmatprep.subr.mxu0 0.0
    %2055 = vmatpush1.msra.mxu0 0.0
    %2056 = vmatprep.subr.mxu0 0.0
    %2057 = vmatpush1.msra.mxu0 0.0
    %2058 = vmatprep.subr.mxu0 0.0
    %2059 = vmatpush1.msra.mxu0 0.0
    %2060 = vmatprep.subr.mxu0 0.0
    %2061 = vmatpush1.msra.mxu0 0.0
    %2062 = vmatprep.subr.mxu0 0.0
    %2063 = vmatpush1.msra.mxu0 0.0
    %2064 = vmatprep.subr.mxu0 0.0
    %2065 = vmatpush1.msra.mxu0 0.0
    %2066 = vmatprep.subr.mxu0 0.0
    %2067 = vmatpush1.msra.mxu0 %v2039
    %2068 = vmatprep.subr.mxu0 0.0
    %2069 = vmatpush1.msra.mxu0 %v2038
    %2070 = vmatprep.subr.mxu0 0.0
    %2071 = vmatpush1.msra.mxu0 %v2037
    %2072 = vmatprep.subr.mxu0 0.0
    %2073 = vmatpush1.msra.mxu0 %v2036
    %2074 = vmatprep.subr.mxu0 0.0
    %2075 = vmatpush1.msra.mxu0 %v2035
    %2076 = vmatprep.subr.mxu0 0.0
    %2077 = vmatpush1.msra.mxu0 %v2034
    %2078 = vmatprep.subr.mxu0 0.0
    %2079 = vmatpush1.msra.mxu0 %v2033
    %2080 = vmatprep.subr.mxu0 0.0
    %2081 = vmatpush1.msra.mxu0 %v2032
    %2082 = vmatprep.subr.mxu0 0.0
    %2083 = vmatpush2.msra.mxu0 0.0
    %2084 = vmatprep.subr.mxu0 0.0
    %2085 = vmatpush2.msra.mxu0 0.0
    %2086 = vmatprep.subr.mxu0 0.0
    %2087 = vmatpush2.msra.mxu0 0.0
    %2088 = vmatprep.subr.mxu0 0.0
    %2089 = vmatpush2.msra.mxu0 0.0
    %2090 = vmatprep.subr.mxu0 0.0
    %2091 = vmatpush2.msra.mxu0 0.0
    %2092 = vmatprep.subr.mxu0 0.0
    %2093 = vmatpush2.msra.mxu0 0.0
    %2094 = vmatprep.subr.mxu0 0.0
    %2095 = vmatpush2.msra.mxu0 0.0
    %2096 = vmatprep.subr.mxu0 0.0
    %2097 = vmatpush2.msra.mxu0 0.0
    %2098 = vmatprep.subr.mxu0 0.0
    %2099 = vmatpush2.msra.mxu0 0.0
    %2100 = vmatprep.subr.mxu0 0.0
    %2101 = vmatpush2.msra.mxu0 0.0
    %2102 = vmatprep.subr.mxu0 0.0
    %2103 = vmatpush2.msra.mxu0 0.0
    %2104 = vmatprep.subr.mxu0 0.0
    %2105 = vmatpush2.msra.mxu0 0.0
    %2106 = vmatprep.subr.mxu0 0.0
    %2107 = vmatpush2.msra.mxu0 0.0
    %2108 = vmatprep.subr.mxu0 0.0
    %2109 = vmatpush2.msra.mxu0 0.0
    %2110 = vmatprep.subr.mxu0 0.0
    %2111 = vmatpush2.msra.mxu0 0.0
    %2112 = vmatprep.subr.mxu0 0.0
    %2113 = vmatpush2.msra.mxu0 0.0
    %2114 = vmatprep.mubr.f32.mxu0 0.0
    %2115 = vmatmul.mubr.f32.gmra.mxu0 %v2048
    %v2116 = vpop.f32.mrf.mxu0
    %v2117 = vadd.f32 %v2045, %v2116
    %v2118 = vpop.f32.mrf.mxu0
    %2119 = vdwg.mxu0
    %vm2120 = vcmask 80896
    %2121 = vst.msk [vmem:[%s8] sm:$0xff] %vm2120, %v2117
    // Predicated region
    $region42: #{rnn_forward.1} parent=1 // pred_check
      _
    $region43: #{rnn_forward.1} parent=1 // pred_check_branch
      %2123 = sbr.rel (0) target = $region45
    $region44: #{rnn_forward.1} parent=1 // pred_region
      _
    $region45: #{rnn_forward.1} parent=1 // pred_fallthru
      _
    // Predicated region
    $region46: #{rnn_forward.1} parent=1 // pred_check
      _
    $region47: #{rnn_forward.1} parent=1 // pred_check_branch
      %2125 = sbr.rel (0) target = $region49
    $region48: #{rnn_forward.1} parent=1 // pred_region
      _
    $region49: #{rnn_forward.1} parent=1 // pred_fallthru
      _
    %2126 = vsyncpa [#allocation4], 1
    %2127 = vsyncpa [#allocation6], 1

</llo_original>
